<compile_context>
chip_gen: v5e
topology: v5e:2x2
jax: 0.10.0
libtpu: 0.0.40
codegen_flags: <defaults>
</compile_context>

<pallas_src>
import functools

import jax
import jax.numpy as jnp
from jax.experimental import pallas as pl
from jax.experimental.pallas import tpu as pltpu


# ---------------------------------------------------------------------------
# In-kernel helpers (f32 epilogue math)
# ---------------------------------------------------------------------------
def _layernorm(h, f_true, gamma, beta, eps):
    """LayerNorm over the first `f_true` lanes of a lane-padded f32 tile.

    Padded gamma/beta lanes are 0 so padded output lanes stay exactly 0,
    which keeps the zero-padding invariant for the next layer's matmuls.
    """
    f_pad = h.shape[-1]
    if f_true == f_pad:                       # no lane padding -> plain LN
        mean = jnp.mean(h, axis=-1, keepdims=True)
        centered = h - mean
        var = jnp.mean(centered * centered, axis=-1, keepdims=True)
    else:
        lane = jax.lax.broadcasted_iota(jnp.int32, h.shape, 1)
        mask = lane < f_true
        inv_f = 1.0 / float(f_true)
        mean = jnp.sum(jnp.where(mask, h, 0.0), axis=-1, keepdims=True) * inv_f
        centered = h - mean
        var = jnp.sum(jnp.where(mask, centered * centered, 0.0),
                      axis=-1, keepdims=True) * inv_f
    inv = jax.lax.rsqrt(var + eps)            # EUP slot, effectively free
    return centered * inv * gamma + beta


def _gcn_fused_kernel(*refs, true_dims, pad_dims, use_ln, layer_norm_first,
                      eps):
    """refs = (adj, x, [ln0_gamma, ln0_beta], {W, b, [gamma, beta]}*, out)."""
    refs = list(refs)
    o_ref = refs.pop()                        # output ref is last (no scratch)

    adj = refs[0][...]                        # bf16 (Np, Np), VMEM resident
    h16 = refs[1][...]                        # bf16 (Np, Fp0) activations
    idx = 2
    num_layers = len(true_dims) - 1

    if layer_norm_first:
        g0 = refs[idx][...]; b0 = refs[idx + 1][...]; idx += 2
        x32 = _layernorm(h16.astype(jnp.float32), true_dims[0], g0, b0, eps)
        h16 = x32.astype(jnp.bfloat16)

    for li in range(num_layers):
        f_out = true_dims[li + 1]
        p_in, p_out = pad_dims[li], pad_dims[li + 1]
        w = refs[idx][...]                    # bf16 (p_in, p_out), zero-padded
        b = refs[idx + 1][...]                # f32  (1, p_out), zero-padded
        idx += 2

        # Pick the contraction order with fewer padded MACs (bf16 operands,
        # f32 MXU accumulation):  adj@(h@W)  vs  (adj@h)@W.
        if p_out >= p_in:
            t = jnp.dot(adj, h16, preferred_element_type=jnp.float32)
            h = jnp.dot(t.astype(jnp.bfloat16), w,
                        preferred_element_type=jnp.float32)
        else:
            t = jnp.dot(h16, w, preferred_element_type=jnp.float32)
            h = jnp.dot(adj, t.astype(jnp.bfloat16),
                        preferred_element_type=jnp.float32)
        h = h + b                             # bias after aggregation

        if li < num_layers - 1:
            if use_ln:
                gamma = refs[idx][...]; beta = refs[idx + 1][...]; idx += 2
                h = _layernorm(h, f_out, gamma, beta, eps)
            h = jnp.maximum(h, 0.0)           # ReLU; dropout(eval) == identity
            h16 = h.astype(jnp.bfloat16)
        else:
            # log_softmax over the true out_channels lanes (padding masked)
            if f_out < h.shape[-1]:
                lane = jax.lax.broadcasted_iota(jnp.int32, h.shape, 1)
                h = jnp.where(lane < f_out, h, -1e30)
            m = jnp.max(h, axis=-1, keepdims=True)
            shifted = h - m
            lse = jnp.log(jnp.sum(jnp.exp(shifted), axis=-1, keepdims=True))
            o_ref[...] = (shifted - lse).astype(o_ref.dtype)


# ---------------------------------------------------------------------------
# Wrapper: pad, pack params, single pallas_call, slice padding off
# ---------------------------------------------------------------------------
_VMEM = pl.BlockSpec(memory_space=pltpu.MemorySpace.VMEM)


def _round_up(v, m):
    return (v + m - 1) // m * m


def _pad_to(a, shape):
    return jnp.pad(a, [(0, t - s) for s, t in zip(a.shape, shape)])


def gcn_forward(x, adj, convs, lns, *, layer_norm_first=False, use_ln=True,
                eps=1e-5):
    # TODO(synk): the `layers != -1` early return of the PyTorch forward
    #             (return an intermediate hidden activation) is not exposed.
    n, in_ch = x.shape
    dims = [in_ch] + [w.shape[1] for (w, _) in convs]
    out_ch = dims[-1]
    num_layers = len(convs)

    pad_dims = [max(128, _round_up(d, 128)) for d in dims]
    n_pad = max(128, _round_up(n, 128))

    # bf16 matmul operands (halves HBM/VMEM bytes, native MXU dtype);
    # f32 bias / affine params for the f32 epilogue.
    args = [
        _pad_to(adj.astype(jnp.bfloat16), (n_pad, n_pad)),
        _pad_to(x.astype(jnp.bfloat16), (n_pad, pad_dims[0])),
    ]
    if layer_norm_first:
        g0, b0 = lns[0]
        args += [
            _pad_to(g0.reshape(1, -1).astype(jnp.float32), (1, pad_dims[0])),
            _pad_to(b0.reshape(1, -1).astype(jnp.float32), (1, pad_dims[0])),
        ]

    for i, (w, b) in enumerate(convs):
        p_in, p_out = pad_dims[i], pad_dims[i + 1]
        args.append(_pad_to(w.astype(jnp.bfloat16), (p_in, p_out)))
        args.append(_pad_to(b.reshape(1, -1).astype(jnp.float32), (1, p_out)))
        if i < num_layers - 1 and use_ln:
            gamma, beta = lns[i + 1]
            args.append(_pad_to(gamma.reshape(1, -1).astype(jnp.float32),
                                (1, p_out)))
            args.append(_pad_to(beta.reshape(1, -1).astype(jnp.float32),
                                (1, p_out)))

    flops = sum(
        2 * min(n_pad * n_pad * pad_dims[i + 1] + n_pad * pad_dims[i] * pad_dims[i + 1],
                n_pad * n_pad * pad_dims[i] + n_pad * pad_dims[i] * pad_dims[i + 1])
        for i in range(num_layers))
    transcendentals = n_pad * pad_dims[-1] + 3 * n_pad * num_layers
    bytes_accessed = (sum(int(a.size) * a.dtype.itemsize for a in args)
                      + n_pad * pad_dims[-1] * 4)

    kernel = functools.partial(
        _gcn_fused_kernel,
        true_dims=tuple(dims), pad_dims=tuple(pad_dims),
        use_ln=use_ln, layer_norm_first=layer_norm_first, eps=eps)

    # TODO(synk): for large N, add a node-row grid axis (parallel
    #             dimension_semantics) so v7x's second TensorCore is used and
    #             adj is tiled to fit its 64 MiB VMEM; at N=128 a grid only
    #             adds per-step overhead.
    out_p = pl.pallas_call(
        kernel,
        out_shape=jax.ShapeDtypeStruct((n_pad, pad_dims[-1]), jnp.float32),
        in_specs=[_VMEM] * len(args),
        out_specs=_VMEM,
        cost_estimate=pl.CostEstimate(flops=flops,
                                      transcendentals=transcendentals,
                                      bytes_accessed=bytes_accessed),
    )(*args)
    return out_p[:n, :out_ch]


# ---------------------------------------------------------------------------
# Parameter init mirroring the PyTorch module's shapes
# ---------------------------------------------------------------------------
def init_gcn_params(key, in_channels, hidden_channels, out_channels,
                    num_layers):
    dims = [in_channels] + [hidden_channels] * (num_layers - 1) + [out_channels]
    convs = []
    for i in range(num_layers):
        key, sub = jax.random.split(key)
        fan_in = dims[i]
        bound = 1.0 / jnp.sqrt(fan_in)
        w = jax.random.uniform(sub, (dims[i], dims[i + 1]), jnp.float32,
                               -bound, bound)
        b = jnp.zeros((dims[i + 1],), jnp.float32)
        convs.append((w, b))
    # lns[0] over in_channels (only used if layer_norm_first); lns[1:] hidden.
    lns = [(jnp.ones((in_channels,), jnp.float32),
            jnp.zeros((in_channels,), jnp.float32))]
    lns += [(jnp.ones((hidden_channels,), jnp.float32),
             jnp.zeros((hidden_channels,), jnp.float32))
            for _ in range(num_layers - 1)]
    return convs, lns


# ---------------------------------------------------------------------------
# Pure-JAX f32 reference (test harness only)
# ---------------------------------------------------------------------------
def gcn_reference(x, adj, convs, lns, use_ln=True, layer_norm_first=False,
                  eps=1e-5):
    def ln(h, params):
        gamma, beta = params
        mean = jnp.mean(h, axis=-1, keepdims=True)
        var = jnp.mean((h - mean) ** 2, axis=-1, keepdims=True)
        return (h - mean) * jax.lax.rsqrt(var + eps) * gamma + beta

    h = x
    if layer_norm_first:
        h = ln(h, lns[0])
    for i, (w, b) in enumerate(convs[:-1]):
        h = adj @ (h @ w) + b
        if use_ln:
            h = ln(h, lns[i + 1])
        h = jnp.maximum(h, 0.0)
    w, b = convs[-1]
    h = adj @ (h @ w) + b
    return jax.nn.log_softmax(h, axis=-1)


# ---------------------------------------------------------------------------
if __name__ == "__main__":
    key = jax.random.PRNGKey(0)

    N = 128
    in_channels, hidden_channels, out_channels = 32, 64, 16
    num_layers = 3

    k_x, k_adj, k_param = jax.random.split(key, 3)
    x = jax.random.normal(k_x, (N, in_channels), jnp.float32)

    # Symmetric normalized adjacency with self loops (dense).
    a = (jax.random.uniform(k_adj, (N, N)) < 0.05).astype(jnp.float32)
    a = jnp.maximum(a, a.T) + jnp.eye(N, dtype=jnp.float32)
    deg = jnp.sum(a, axis=1)
    d_inv_sqrt = 1.0 / jnp.sqrt(deg)
    adj = a * d_inv_sqrt[:, None] * d_inv_sqrt[None, :]

    convs, lns = init_gcn_params(k_param, in_channels, hidden_channels,
                                 out_channels, num_layers)

    out = gcn_forward(x, adj, convs, lns)
    out = jax.block_until_ready(out)

    assert out.shape == (N, out_channels)
    # log_softmax rows should sum to 1 after exp
    row_sums = jnp.sum(jnp.exp(out), axis=-1)
    assert bool(jnp.all(jnp.abs(row_sums - 1.0) < 1e-3))
    # loose comparison against f32 reference (kernel matmuls run in bf16)
    ref = gcn_reference(x, adj, convs, lns)
    assert bool(jnp.max(jnp.abs(out - ref)) < 0.5)
    print("KERNEL_OK")
</pallas_src>

<mosaic_0001>
module attributes {stable_mosaic.version = 11 : i64} {
  func.func @_gcn_fused_kernel(%arg0: memref<128x128xbf16, #tpu.memory_space<vmem>>, %arg1: memref<128x128xbf16, #tpu.memory_space<vmem>>, %arg2: memref<128x128xbf16, #tpu.memory_space<vmem>>, %arg3: memref<1x128xf32, #tpu.memory_space<vmem>>, %arg4: memref<1x128xf32, #tpu.memory_space<vmem>>, %arg5: memref<1x128xf32, #tpu.memory_space<vmem>>, %arg6: memref<128x128xbf16, #tpu.memory_space<vmem>>, %arg7: memref<1x128xf32, #tpu.memory_space<vmem>>, %arg8: memref<1x128xf32, #tpu.memory_space<vmem>>, %arg9: memref<1x128xf32, #tpu.memory_space<vmem>>, %arg10: memref<128x128xbf16, #tpu.memory_space<vmem>>, %arg11: memref<1x128xf32, #tpu.memory_space<vmem>>, %arg12: memref<128x128xf32, #tpu.memory_space<vmem>>) attributes {dimension_semantics = [], scalar_prefetch = 0 : i64, scratch_operands = 0 : i64, tpu.core_type = #tpu.core_type<tc>} {
    %c0 = arith.constant 0 : index
    %c0_0 = arith.constant 0 : index
    %0 = vector.load %arg0[%c0, %c0_0] : memref<128x128xbf16, #tpu.memory_space<vmem>>, vector<128x128xbf16>
    %c0_1 = arith.constant 0 : index
    %c0_2 = arith.constant 0 : index
    %1 = vector.load %arg1[%c0_1, %c0_2] : memref<128x128xbf16, #tpu.memory_space<vmem>>, vector<128x128xbf16>
    %c0_3 = arith.constant 0 : index
    %c0_4 = arith.constant 0 : index
    %2 = vector.load %arg2[%c0_3, %c0_4] : memref<128x128xbf16, #tpu.memory_space<vmem>>, vector<128x128xbf16>
    %c0_5 = arith.constant 0 : index
    %c0_6 = arith.constant 0 : index
    %3 = vector.load %arg3[%c0_5, %c0_6] : memref<1x128xf32, #tpu.memory_space<vmem>>, vector<1x128xf32>
    %cst = arith.constant dense<0.000000e+00> : vector<128x128xf32>
    %4 = tpu.matmul %0, %1, %cst {dimension_numbers = #tpu.dot_dimension_numbers<[1], [0], [0], [1], [0, 0, 1, 1], [], []>} : vector<128x128xbf16>, vector<128x128xbf16>, vector<128x128xf32> -> vector<128x128xf32>
    %5 = arith.truncf %4 : vector<128x128xf32> to vector<128x128xbf16>
    %cst_7 = arith.constant dense<0.000000e+00> : vector<128x128xf32>
    %6 = tpu.matmul %5, %2, %cst_7 {dimension_numbers = #tpu.dot_dimension_numbers<[1], [0], [0], [1], [0, 0, 1, 1], [], []>} : vector<128x128xbf16>, vector<128x128xbf16>, vector<128x128xf32> -> vector<128x128xf32>
    %7 = vector.broadcast %3 : vector<1x128xf32> to vector<128x128xf32>
    %8 = arith.addf %6, %7 : vector<128x128xf32>
    %c0_8 = arith.constant 0 : index
    %c0_9 = arith.constant 0 : index
    %9 = vector.load %arg4[%c0_8, %c0_9] : memref<1x128xf32, #tpu.memory_space<vmem>>, vector<1x128xf32>
    %c0_10 = arith.constant 0 : index
    %c0_11 = arith.constant 0 : index
    %10 = vector.load %arg5[%c0_10, %c0_11] : memref<1x128xf32, #tpu.memory_space<vmem>>, vector<1x128xf32>
    %11 = tpu.iota {dimensions = array<i32: 1>} : vector<128x128xi32>
    %c64_i32 = arith.constant 64 : i32
    %12 = vector.broadcast %c64_i32 : i32 to vector<128x128xi32>
    %13 = arith.cmpi slt, %11, %12 : vector<128x128xi32>
    %cst_12 = arith.constant 0.000000e+00 : f32
    %14 = vector.broadcast %cst_12 : f32 to vector<128x128xf32>
    %15 = arith.select %13, %8, %14 : vector<128x128xi1>, vector<128x128xf32>
    %cst_13 = arith.constant dense<0.000000e+00> : vector<128xf32>
    %16 = vector.multi_reduction <add>, %15, %cst_13 [1] : vector<128x128xf32> to vector<128xf32>
    %17 = vector.shape_cast %16 : vector<128xf32> to vector<128x1xf32>
    %cst_14 = arith.constant 1.562500e-02 : f32
    %18 = vector.broadcast %cst_14 : f32 to vector<128x1xf32>
    %19 = arith.mulf %17, %18 : vector<128x1xf32>
    %20 = vector.broadcast %19 : vector<128x1xf32> to vector<128x128xf32>
    %21 = arith.subf %8, %20 : vector<128x128xf32>
    %22 = arith.mulf %21, %21 : vector<128x128xf32>
    %cst_15 = arith.constant 0.000000e+00 : f32
    %23 = vector.broadcast %cst_15 : f32 to vector<128x128xf32>
    %24 = arith.select %13, %22, %23 : vector<128x128xi1>, vector<128x128xf32>
    %cst_16 = arith.constant dense<0.000000e+00> : vector<128xf32>
    %25 = vector.multi_reduction <add>, %24, %cst_16 [1] : vector<128x128xf32> to vector<128xf32>
    %26 = vector.shape_cast %25 : vector<128xf32> to vector<128x1xf32>
    %cst_17 = arith.constant 1.562500e-02 : f32
    %27 = vector.broadcast %cst_17 : f32 to vector<128x1xf32>
    %28 = arith.mulf %26, %27 : vector<128x1xf32>
    %cst_18 = arith.constant 9.99999974E-6 : f32
    %29 = vector.broadcast %cst_18 : f32 to vector<128x1xf32>
    %30 = arith.addf %28, %29 : vector<128x1xf32>
    %31 = math.rsqrt %30 : vector<128x1xf32>
    %32 = vector.broadcast %31 : vector<128x1xf32> to vector<128x128xf32>
    %33 = arith.mulf %21, %32 : vector<128x128xf32>
    %34 = vector.broadcast %9 : vector<1x128xf32> to vector<128x128xf32>
    %35 = arith.mulf %33, %34 : vector<128x128xf32>
    %36 = vector.broadcast %10 : vector<1x128xf32> to vector<128x128xf32>
    %37 = arith.addf %35, %36 : vector<128x128xf32>
    %cst_19 = arith.constant 0.000000e+00 : f32
    %38 = vector.broadcast %cst_19 : f32 to vector<128x128xf32>
    %39 = arith.maximumf %37, %38 : vector<128x128xf32>
    %40 = arith.truncf %39 : vector<128x128xf32> to vector<128x128xbf16>
    %c0_20 = arith.constant 0 : index
    %c0_21 = arith.constant 0 : index
    %41 = vector.load %arg6[%c0_20, %c0_21] : memref<128x128xbf16, #tpu.memory_space<vmem>>, vector<128x128xbf16>
    %c0_22 = arith.constant 0 : index
    %c0_23 = arith.constant 0 : index
    %42 = vector.load %arg7[%c0_22, %c0_23] : memref<1x128xf32, #tpu.memory_space<vmem>>, vector<1x128xf32>
    %cst_24 = arith.constant dense<0.000000e+00> : vector<128x128xf32>
    %43 = tpu.matmul %0, %40, %cst_24 {dimension_numbers = #tpu.dot_dimension_numbers<[1], [0], [0], [1], [0, 0, 1, 1], [], []>} : vector<128x128xbf16>, vector<128x128xbf16>, vector<128x128xf32> -> vector<128x128xf32>
    %44 = arith.truncf %43 : vector<128x128xf32> to vector<128x128xbf16>
    %cst_25 = arith.constant dense<0.000000e+00> : vector<128x128xf32>
    %45 = tpu.matmul %44, %41, %cst_25 {dimension_numbers = #tpu.dot_dimension_numbers<[1], [0], [0], [1], [0, 0, 1, 1], [], []>} : vector<128x128xbf16>, vector<128x128xbf16>, vector<128x128xf32> -> vector<128x128xf32>
    %46 = vector.broadcast %42 : vector<1x128xf32> to vector<128x128xf32>
    %47 = arith.addf %45, %46 : vector<128x128xf32>
    %c0_26 = arith.constant 0 : index
    %c0_27 = arith.constant 0 : index
    %48 = vector.load %arg8[%c0_26, %c0_27] : memref<1x128xf32, #tpu.memory_space<vmem>>, vector<1x128xf32>
    %c0_28 = arith.constant 0 : index
    %c0_29 = arith.constant 0 : index
    %49 = vector.load %arg9[%c0_28, %c0_29] : memref<1x128xf32, #tpu.memory_space<vmem>>, vector<1x128xf32>
    %50 = tpu.iota {dimensions = array<i32: 1>} : vector<128x128xi32>
    %c64_i32_30 = arith.constant 64 : i32
    %51 = vector.broadcast %c64_i32_30 : i32 to vector<128x128xi32>
    %52 = arith.cmpi slt, %50, %51 : vector<128x128xi32>
    %cst_31 = arith.constant 0.000000e+00 : f32
    %53 = vector.broadcast %cst_31 : f32 to vector<128x128xf32>
    %54 = arith.select %52, %47, %53 : vector<128x128xi1>, vector<128x128xf32>
    %cst_32 = arith.constant dense<0.000000e+00> : vector<128xf32>
    %55 = vector.multi_reduction <add>, %54, %cst_32 [1] : vector<128x128xf32> to vector<128xf32>
    %56 = vector.shape_cast %55 : vector<128xf32> to vector<128x1xf32>
    %cst_33 = arith.constant 1.562500e-02 : f32
    %57 = vector.broadcast %cst_33 : f32 to vector<128x1xf32>
    %58 = arith.mulf %56, %57 : vector<128x1xf32>
    %59 = vector.broadcast %58 : vector<128x1xf32> to vector<128x128xf32>
    %60 = arith.subf %47, %59 : vector<128x128xf32>
    %61 = arith.mulf %60, %60 : vector<128x128xf32>
    %cst_34 = arith.constant 0.000000e+00 : f32
    %62 = vector.broadcast %cst_34 : f32 to vector<128x128xf32>
    %63 = arith.select %52, %61, %62 : vector<128x128xi1>, vector<128x128xf32>
    %cst_35 = arith.constant dense<0.000000e+00> : vector<128xf32>
    %64 = vector.multi_reduction <add>, %63, %cst_35 [1] : vector<128x128xf32> to vector<128xf32>
    %65 = vector.shape_cast %64 : vector<128xf32> to vector<128x1xf32>
    %cst_36 = arith.constant 1.562500e-02 : f32
    %66 = vector.broadcast %cst_36 : f32 to vector<128x1xf32>
    %67 = arith.mulf %65, %66 : vector<128x1xf32>
    %cst_37 = arith.constant 9.99999974E-6 : f32
    %68 = vector.broadcast %cst_37 : f32 to vector<128x1xf32>
    %69 = arith.addf %67, %68 : vector<128x1xf32>
    %70 = math.rsqrt %69 : vector<128x1xf32>
    %71 = vector.broadcast %70 : vector<128x1xf32> to vector<128x128xf32>
    %72 = arith.mulf %60, %71 : vector<128x128xf32>
    %73 = vector.broadcast %48 : vector<1x128xf32> to vector<128x128xf32>
    %74 = arith.mulf %72, %73 : vector<128x128xf32>
    %75 = vector.broadcast %49 : vector<1x128xf32> to vector<128x128xf32>
    %76 = arith.addf %74, %75 : vector<128x128xf32>
    %cst_38 = arith.constant 0.000000e+00 : f32
    %77 = vector.broadcast %cst_38 : f32 to vector<128x128xf32>
    %78 = arith.maximumf %76, %77 : vector<128x128xf32>
    %79 = arith.truncf %78 : vector<128x128xf32> to vector<128x128xbf16>
    %c0_39 = arith.constant 0 : index
    %c0_40 = arith.constant 0 : index
    %80 = vector.load %arg10[%c0_39, %c0_40] : memref<128x128xbf16, #tpu.memory_space<vmem>>, vector<128x128xbf16>
    %c0_41 = arith.constant 0 : index
    %c0_42 = arith.constant 0 : index
    %81 = vector.load %arg11[%c0_41, %c0_42] : memref<1x128xf32, #tpu.memory_space<vmem>>, vector<1x128xf32>
    %cst_43 = arith.constant dense<0.000000e+00> : vector<128x128xf32>
    %82 = tpu.matmul %0, %79, %cst_43 {dimension_numbers = #tpu.dot_dimension_numbers<[1], [0], [0], [1], [0, 0, 1, 1], [], []>} : vector<128x128xbf16>, vector<128x128xbf16>, vector<128x128xf32> -> vector<128x128xf32>
    %83 = arith.truncf %82 : vector<128x128xf32> to vector<128x128xbf16>
    %cst_44 = arith.constant dense<0.000000e+00> : vector<128x128xf32>
    %84 = tpu.matmul %83, %80, %cst_44 {dimension_numbers = #tpu.dot_dimension_numbers<[1], [0], [0], [1], [0, 0, 1, 1], [], []>} : vector<128x128xbf16>, vector<128x128xbf16>, vector<128x128xf32> -> vector<128x128xf32>
    %85 = vector.broadcast %81 : vector<1x128xf32> to vector<128x128xf32>
    %86 = arith.addf %84, %85 : vector<128x128xf32>
    %87 = tpu.iota {dimensions = array<i32: 1>} : vector<128x128xi32>
    %c16_i32 = arith.constant 16 : i32
    %88 = vector.broadcast %c16_i32 : i32 to vector<128x128xi32>
    %89 = arith.cmpi slt, %87, %88 : vector<128x128xi32>
    %cst_45 = arith.constant -1.000000e+30 : f32
    %90 = vector.broadcast %cst_45 : f32 to vector<128x128xf32>
    %91 = arith.select %89, %86, %90 : vector<128x128xi1>, vector<128x128xf32>
    %cst_46 = arith.constant dense<0xFF800000> : vector<128xf32>
    %92 = vector.multi_reduction <maximumf>, %91, %cst_46 [1] : vector<128x128xf32> to vector<128xf32>
    %93 = vector.shape_cast %92 : vector<128xf32> to vector<128x1xf32>
    %94 = vector.broadcast %93 : vector<128x1xf32> to vector<128x128xf32>
    %95 = arith.subf %91, %94 : vector<128x128xf32>
    %96 = math.exp %95 : vector<128x128xf32>
    %cst_47 = arith.constant dense<0.000000e+00> : vector<128xf32>
    %97 = vector.multi_reduction <add>, %96, %cst_47 [1] : vector<128x128xf32> to vector<128xf32>
    %98 = vector.shape_cast %97 : vector<128xf32> to vector<128x1xf32>
    %99 = math.log %98 : vector<128x1xf32>
    %100 = vector.broadcast %99 : vector<128x1xf32> to vector<128x128xf32>
    %101 = arith.subf %95, %100 : vector<128x128xf32>
    %c0_48 = arith.constant 0 : index
    %c0_49 = arith.constant 0 : index
    %102 = vector.load %arg12[%c0_48, %c0_49] : memref<128x128xf32, #tpu.memory_space<vmem>>, vector<128x128xf32>
    tpu.vector_store %arg12[%c0_48, %c0_49], %101 {strides = array<i32>} : memref<128x128xf32, #tpu.memory_space<vmem>>, vector<128x128xf32>,
    return
  }
}

</mosaic_0001>

<llo_original>
// kernel: tpu_custom_call.1
$region0: #{tpu_custom_call.1}
  #allocation0 [shape = 'u32[]', space=smem, size = 0x4, offset = 0x4, fixed_abs, tag = 'smem constant byte address 0x4 - core index']
  #allocation1 [shape = 'u32[72,128]{1,0:T(1,128)}', space=vmem, size = 0x9000, scoped, tag = 'internal scratch']
  %s0 = inlined_call_operand.hbm [shape: bf16[128,128], index: 0, kind: input, shape index: {}]
  %s1 = inlined_call_operand.hbm [shape: bf16[128,128], index: 1, kind: input, shape index: {}]
  %s2 = inlined_call_operand.hbm [shape: bf16[128,128], index: 2, kind: input, shape index: {}]
  %s3 = inlined_call_operand.vmem [shape: f32[1,128], index: 3, kind: input, shape index: {}]
  %s4 = inlined_call_operand.vmem [shape: f32[1,128], index: 4, kind: input, shape index: {}]
  %s5 = inlined_call_operand.vmem [shape: f32[1,128], index: 5, kind: input, shape index: {}]
  %s6 = inlined_call_operand.hbm [shape: bf16[128,128], index: 6, kind: input, shape index: {}]
  %s7 = inlined_call_operand.vmem [shape: f32[1,128], index: 7, kind: input, shape index: {}]
  %s8 = inlined_call_operand.vmem [shape: f32[1,128], index: 8, kind: input, shape index: {}]
  %s9 = inlined_call_operand.vmem [shape: f32[1,128], index: 9, kind: input, shape index: {}]
  %s10 = inlined_call_operand.hbm [shape: bf16[128,128], index: 10, kind: input, shape index: {}]
  %s11 = inlined_call_operand.vmem [shape: f32[1,128], index: 11, kind: input, shape index: {}]
  %s12 = inlined_call_operand.hbm [shape: f32[128,128], index: 12, kind: output, shape index: {}]
  %s13 = sld [smem:[#allocation0]]
  $region78: #{tpu_custom_call.1} parent=0
    _
  %s15 = ssub.s32 1, %s13
  %s16 = scalar_select 0, %s15, %s13
  $region1: #{tpu_custom_call.1} parent=0
    #allocation2 [shape = 'u8[32768]{0}', space=vmem, size = 0x8000, scoped, tag = 'input window, operand 0, single buffered']
    #allocation3 [shape = 's32[1]{0}', space=sflag, size = 0x4, scoped, tag = 'scoped memory for tpu_custom_call.1']
    #allocation4 [shape = 's32[1]{0}', space=sflag, size = 0x4, scoped, tag = 'scoped memory for tpu_custom_call.1']
    #allocation5 [shape = 'u8[32768]{0}', space=vmem, size = 0x8000, scoped, tag = 'input window, operand 1, single buffered']
    #allocation6 [shape = 's32[1]{0}', space=sflag, size = 0x4, scoped, tag = 'scoped memory for tpu_custom_call.1']
    #allocation7 [shape = 'u8[32768]{0}', space=vmem, size = 0x8000, scoped, tag = 'input window, operand 2, single buffered']
    #allocation8 [shape = 'u8[32768]{0}', space=vmem, size = 0x8000, scoped, tag = 'input window, operand 6, single buffered']
    #allocation9 [shape = 's32[1]{0}', space=sflag, size = 0x4, scoped, tag = 'scoped memory for tpu_custom_call.1']
    #allocation10 [shape = 'u8[32768]{0}', space=vmem, size = 0x8000, scoped, tag = 'input window, operand 10, single buffered']
    #allocation11 [shape = 'u8[65536]{0}', space=vmem, size = 0x10000, scoped, tag = 'output window, operand 0, single buffered']
    %17 = vsyncpa [#allocation3], 0
    %18 = vsyncpa [#allocation6], 0
    %19 = vsyncpa [#allocation9], 0
    %20 = vsyncpa [#allocation4], 0
    // Predicated region
    $region2: #{tpu_custom_call.1} parent=1 // pred_check
      _
    $region3: #{tpu_custom_call.1} parent=1 // pred_check_branch
      %22 = sbr.rel (0) target = $region5
    $region4: #{tpu_custom_call.1} parent=1 // pred_region
      %24 = vsyncadd [#allocation3], 0
      %s25 = sshll.u32 %s0, 4
      %s26 = int_to_ptr.hbm [resolvable:$true] %s25
      %s27 = sshll.u32 [#allocation2], 4
      %s28 = int_to_ptr.vmem [resolvable:$true] %s27
      %33 = dma.hbm_to_vmem [thread:$0]  %s26, 1024, %s28, [#allocation3], 64, 64, 4
    $region5: #{tpu_custom_call.1} parent=1 // pred_fallthru
      _
    // Predicated region
    $region6: #{tpu_custom_call.1} parent=1 // pred_check
      _
    $region7: #{tpu_custom_call.1} parent=1 // pred_check_branch
      %35 = sbr.rel (0) target = $region9
    $region8: #{tpu_custom_call.1} parent=1 // pred_region
      %37 = vsyncadd [#allocation6], 0
      %s38 = sshll.u32 %s1, 4
      %s39 = int_to_ptr.hbm [resolvable:$true] %s38
      %s40 = sshll.u32 [#allocation5], 4
      %s41 = int_to_ptr.vmem [resolvable:$true] %s40
      %46 = dma.hbm_to_vmem [thread:$0]  %s39, 1024, %s41, [#allocation6], 64, 64, 4
    $region9: #{tpu_custom_call.1} parent=1 // pred_fallthru
      _
    // Predicated region
    $region10: #{tpu_custom_call.1} parent=1 // pred_check
      _
    $region11: #{tpu_custom_call.1} parent=1 // pred_check_branch
      %48 = sbr.rel (0) target = $region13
    $region12: #{tpu_custom_call.1} parent=1 // pred_region
      %50 = vsyncadd [#allocation6], 0
      %s51 = sshll.u32 %s2, 4
      %s52 = int_to_ptr.hbm [resolvable:$true] %s51
      %s53 = sshll.u32 [#allocation7], 4
      %s54 = int_to_ptr.vmem [resolvable:$true] %s53
      %59 = dma.hbm_to_vmem [thread:$0]  %s52, 1024, %s54, [#allocation6], 64, 64, 4
    $region13: #{tpu_custom_call.1} parent=1 // pred_fallthru
      _
    // Predicated region
    $region14: #{tpu_custom_call.1} parent=1 // pred_check
      _
    $region15: #{tpu_custom_call.1} parent=1 // pred_check_branch
      %61 = sbr.rel (0) target = $region17
    $region16: #{tpu_custom_call.1} parent=1 // pred_region
      _
    $region17: #{tpu_custom_call.1} parent=1 // pred_fallthru
      _
    // Predicated region
    $region18: #{tpu_custom_call.1} parent=1 // pred_check
      _
    $region19: #{tpu_custom_call.1} parent=1 // pred_check_branch
      %63 = sbr.rel (0) target = $region21
    $region20: #{tpu_custom_call.1} parent=1 // pred_region
      _
    $region21: #{tpu_custom_call.1} parent=1 // pred_fallthru
      _
    // Predicated region
    $region22: #{tpu_custom_call.1} parent=1 // pred_check
      _
    $region23: #{tpu_custom_call.1} parent=1 // pred_check_branch
      %65 = sbr.rel (0) target = $region25
    $region24: #{tpu_custom_call.1} parent=1 // pred_region
      _
    $region25: #{tpu_custom_call.1} parent=1 // pred_fallthru
      _
    // Predicated region
    $region26: #{tpu_custom_call.1} parent=1 // pred_check
      _
    $region27: #{tpu_custom_call.1} parent=1 // pred_check_branch
      %67 = sbr.rel (0) target = $region29
    $region28: #{tpu_custom_call.1} parent=1 // pred_region
      %69 = vsyncadd [#allocation9], 0
      %s70 = sshll.u32 %s6, 4
      %s71 = int_to_ptr.hbm [resolvable:$true] %s70
      %s72 = sshll.u32 [#allocation8], 4
      %s73 = int_to_ptr.vmem [resolvable:$true] %s72
      %78 = dma.hbm_to_vmem [thread:$0]  %s71, 1024, %s73, [#allocation9], 64, 64, 4
    $region29: #{tpu_custom_call.1} parent=1 // pred_fallthru
      _
    // Predicated region
    $region30: #{tpu_custom_call.1} parent=1 // pred_check
      _
    $region31: #{tpu_custom_call.1} parent=1 // pred_check_branch
      %80 = sbr.rel (0) target = $region33
    $region32: #{tpu_custom_call.1} parent=1 // pred_region
      _
    $region33: #{tpu_custom_call.1} parent=1 // pred_fallthru
      _
    // Predicated region
    $region34: #{tpu_custom_call.1} parent=1 // pred_check
      _
    $region35: #{tpu_custom_call.1} parent=1 // pred_check_branch
      %82 = sbr.rel (0) target = $region37
    $region36: #{tpu_custom_call.1} parent=1 // pred_region
      _
    $region37: #{tpu_custom_call.1} parent=1 // pred_fallthru
      _
    // Predicated region
    $region38: #{tpu_custom_call.1} parent=1 // pred_check
      _
    $region39: #{tpu_custom_call.1} parent=1 // pred_check_branch
      %84 = sbr.rel (0) target = $region41
    $region40: #{tpu_custom_call.1} parent=1 // pred_region
      _
    $region41: #{tpu_custom_call.1} parent=1 // pred_fallthru
      _
    // Predicated region
    $region42: #{tpu_custom_call.1} parent=1 // pred_check
      _
    $region43: #{tpu_custom_call.1} parent=1 // pred_check_branch
      %86 = sbr.rel (0) target = $region45
    $region44: #{tpu_custom_call.1} parent=1 // pred_region
      %88 = vsyncadd [#allocation9], 0
      %s89 = sshll.u32 %s10, 4
      %s90 = int_to_ptr.hbm [resolvable:$true] %s89
      %s91 = sshll.u32 [#allocation10], 4
      %s92 = int_to_ptr.vmem [resolvable:$true] %s91
      %97 = dma.hbm_to_vmem [thread:$0]  %s90, 1024, %s92, [#allocation9], 64, 64, 4
    $region45: #{tpu_custom_call.1} parent=1 // pred_fallthru
      _
    // Predicated region
    $region46: #{tpu_custom_call.1} parent=1 // pred_check
      _
    $region47: #{tpu_custom_call.1} parent=1 // pred_check_branch
      %99 = sbr.rel (0) target = $region49
    $region48: #{tpu_custom_call.1} parent=1 // pred_region
      _
    $region49: #{tpu_custom_call.1} parent=1 // pred_fallthru
      _
    // Predicated region
    $region50: #{tpu_custom_call.1} parent=1 // pred_check
      _
    $region51: #{tpu_custom_call.1} parent=1 // pred_check_branch
      %101 = sbr.rel (0) target = $region53
    $region52: #{tpu_custom_call.1} parent=1 // pred_region
      %103 = dma.done [#allocation3], 1024
    $region53: #{tpu_custom_call.1} parent=1 // pred_fallthru
      _
    // Predicated region
    $region54: #{tpu_custom_call.1} parent=1 // pred_check
      _
    $region55: #{tpu_custom_call.1} parent=1 // pred_check_branch
      %105 = sbr.rel (0) target = $region57
    $region56: #{tpu_custom_call.1} parent=1 // pred_region
      %107 = dma.done [#allocation6], 1024
    $region57: #{tpu_custom_call.1} parent=1 // pred_fallthru
      _
    // Predicated region
    $region58: #{tpu_custom_call.1} parent=1 // pred_check
      _
    $region59: #{tpu_custom_call.1} parent=1 // pred_check_branch
      %109 = sbr.rel (0) target = $region61
    $region60: #{tpu_custom_call.1} parent=1 // pred_region
      %111 = dma.done [#allocation6], 1024
    $region61: #{tpu_custom_call.1} parent=1 // pred_fallthru
      _
    // Predicated region
    $region62: #{tpu_custom_call.1} parent=1 // pred_check
      _
    $region63: #{tpu_custom_call.1} parent=1 // pred_check_branch
      %113 = sbr.rel (0) target = $region65
    $region64: #{tpu_custom_call.1} parent=1 // pred_region
      %115 = dma.done [#allocation9], 1024
    $region65: #{tpu_custom_call.1} parent=1 // pred_fallthru
      _
    // Predicated region
    $region66: #{tpu_custom_call.1} parent=1 // pred_check
      _
    $region67: #{tpu_custom_call.1} parent=1 // pred_check_branch
      %117 = sbr.rel (0) target = $region69
    $region68: #{tpu_custom_call.1} parent=1 // pred_region
      %119 = dma.done [#allocation9], 1024
    $region69: #{tpu_custom_call.1} parent=1 // pred_fallthru
      _
    %v120 = vld [vmem:[#allocation2] sm:$0xf]
    %v121 = vld [vmem:[#allocation2 + $0x4] sm:$0xf]
    %v122 = vld [vmem:[#allocation2 + $0x8] sm:$0xf]
    %v123 = vld [vmem:[#allocation2 + $0xc] sm:$0xf]
    %v124 = vld [vmem:[#allocation2 + $0x10] sm:$0xf]
    %v125 = vld [vmem:[#allocation2 + $0x14] sm:$0xf]
    %v126 = vld [vmem:[#allocation2 + $0x18] sm:$0xf]
    %v127 = vld [vmem:[#allocation2 + $0x1c] sm:$0xf]
    %v128 = vld [vmem:[#allocation2 + $0x20] sm:$0xf]
    %v129 = vld [vmem:[#allocation2 + $0x24] sm:$0xf]
    %v130 = vld [vmem:[#allocation2 + $0x28] sm:$0xf]
    %v131 = vld [vmem:[#allocation2 + $0x2c] sm:$0xf]
    %v132 = vld [vmem:[#allocation2 + $0x30] sm:$0xf]
    %v133 = vld [vmem:[#allocation2 + $0x34] sm:$0xf]
    %v134 = vld [vmem:[#allocation2 + $0x38] sm:$0xf]
    %v135 = vld [vmem:[#allocation2 + $0x3c] sm:$0xf]
    %v136 = vld [vmem:[#allocation5] sm:$0xf]
    %v137 = vld [vmem:[#allocation5 + $0x4] sm:$0xf]
    %v138 = vld [vmem:[#allocation5 + $0x8] sm:$0xf]
    %v139 = vld [vmem:[#allocation5 + $0xc] sm:$0xf]
    %v140 = vld [vmem:[#allocation5 + $0x10] sm:$0xf]
    %v141 = vld [vmem:[#allocation5 + $0x14] sm:$0xf]
    %v142 = vld [vmem:[#allocation5 + $0x18] sm:$0xf]
    %v143 = vld [vmem:[#allocation5 + $0x1c] sm:$0xf]
    %v144 = vld [vmem:[#allocation5 + $0x20] sm:$0xf]
    %v145 = vld [vmem:[#allocation5 + $0x24] sm:$0xf]
    %v146 = vld [vmem:[#allocation5 + $0x28] sm:$0xf]
    %v147 = vld [vmem:[#allocation5 + $0x2c] sm:$0xf]
    %v148 = vld [vmem:[#allocation5 + $0x30] sm:$0xf]
    %v149 = vld [vmem:[#allocation5 + $0x34] sm:$0xf]
    %v150 = vld [vmem:[#allocation5 + $0x38] sm:$0xf]
    %v151 = vld [vmem:[#allocation5 + $0x3c] sm:$0xf]
    %v152 = vld [vmem:[#allocation7] sm:$0xf]
    %v153 = vld [vmem:[#allocation7 + $0x4] sm:$0xf]
    %v154 = vld [vmem:[#allocation7 + $0x8] sm:$0xf]
    %v155 = vld [vmem:[#allocation7 + $0xc] sm:$0xf]
    %v156 = vld [vmem:[#allocation7 + $0x10] sm:$0xf]
    %v157 = vld [vmem:[#allocation7 + $0x14] sm:$0xf]
    %v158 = vld [vmem:[#allocation7 + $0x18] sm:$0xf]
    %v159 = vld [vmem:[#allocation7 + $0x1c] sm:$0xf]
    %v160 = vld [vmem:[#allocation7 + $0x20] sm:$0xf]
    %v161 = vld [vmem:[#allocation7 + $0x24] sm:$0xf]
    %v162 = vld [vmem:[#allocation7 + $0x28] sm:$0xf]
    %v163 = vld [vmem:[#allocation7 + $0x2c] sm:$0xf]
    %v164 = vld [vmem:[#allocation7 + $0x30] sm:$0xf]
    %v165 = vld [vmem:[#allocation7 + $0x34] sm:$0xf]
    %v166 = vld [vmem:[#allocation7 + $0x38] sm:$0xf]
    %v167 = vld [vmem:[#allocation7 + $0x3c] sm:$0xf]
    %v168 = vld [vmem:[%s3] sm:$0x1]
    %v185 = vunpack.c.l.b16 %v120
    %v186 = vunpack.c.l.b16 %v121
    %v187 = vunpack.c.l.b16 %v122
    %v188 = vunpack.c.l.b16 %v123
    %v189 = vunpack.c.l.b16 %v124
    %v190 = vunpack.c.l.b16 %v125
    %v191 = vunpack.c.l.b16 %v126
    %v192 = vunpack.c.l.b16 %v127
    %v193 = vunpack.c.l.b16 %v128
    %v194 = vunpack.c.l.b16 %v129
    %v195 = vunpack.c.l.b16 %v130
    %v196 = vunpack.c.l.b16 %v131
    %v197 = vunpack.c.l.b16 %v132
    %v198 = vunpack.c.l.b16 %v133
    %v199 = vunpack.c.l.b16 %v134
    %v200 = vunpack.c.l.b16 %v135
    %v201 = vpack.c.b16 %v186, %v185
    %v202 = vpack.c.b16 %v188, %v187
    %v203 = vpack.c.b16 %v190, %v189
    %v204 = vpack.c.b16 %v192, %v191
    %v205 = vpack.c.b16 %v194, %v193
    %v206 = vpack.c.b16 %v196, %v195
    %v207 = vpack.c.b16 %v198, %v197
    %v208 = vpack.c.b16 %v200, %v199
    %v233 = vunpack.c.l.b16 %v136
    %v234 = vunpack.c.l.b16 %v137
    %v235 = vunpack.c.l.b16 %v138
    %v236 = vunpack.c.l.b16 %v139
    %v237 = vunpack.c.l.b16 %v140
    %v238 = vunpack.c.l.b16 %v141
    %v239 = vunpack.c.l.b16 %v142
    %v240 = vunpack.c.l.b16 %v143
    %v241 = vunpack.c.l.b16 %v144
    %v242 = vunpack.c.l.b16 %v145
    %v243 = vunpack.c.l.b16 %v146
    %v244 = vunpack.c.l.b16 %v147
    %v245 = vunpack.c.l.b16 %v148
    %v246 = vunpack.c.l.b16 %v149
    %v247 = vunpack.c.l.b16 %v150
    %v248 = vunpack.c.l.b16 %v151
    %v249 = vpack.c.b16 %v234, %v233
    %v250 = vpack.c.b16 %v236, %v235
    %v251 = vpack.c.b16 %v238, %v237
    %v252 = vpack.c.b16 %v240, %v239
    %v253 = vpack.c.b16 %v242, %v241
    %v254 = vpack.c.b16 %v244, %v243
    %v255 = vpack.c.b16 %v246, %v245
    %v256 = vpack.c.b16 %v248, %v247
    %265 = vmatpush.bf16.msra.mxu0 %v256
    %266 = vmatpush.bf16.msra.mxu0 %v255
    %267 = vmatpush.bf16.msra.mxu0 %v254
    %268 = vmatpush.bf16.msra.mxu0 %v253
    %269 = vmatpush.bf16.msra.mxu0 %v252
    %270 = vmatpush.bf16.msra.mxu0 %v251
    %271 = vmatpush.bf16.msra.mxu0 %v250
    %272 = vmatpush.bf16.msra.mxu0 %v249
    %273 = vmatmul.bf16.gmra.mxu0 %v201
    %v274 = vpop.f32.mrf.mxu0
    %v275 = vadd.f32 0.0, %v274
    %v276 = vpop.f32.mrf.mxu0
    %v277 = vadd.f32 0.0, %v276
    %278 = vmatmul.bf16.gmra.mxu0 %v202
    %v279 = vpop.f32.mrf.mxu0
    %v280 = vadd.f32 0.0, %v279
    %v281 = vpop.f32.mrf.mxu0
    %v282 = vadd.f32 0.0, %v281
    %283 = vmatmul.bf16.gmra.mxu0 %v203
    %v284 = vpop.f32.mrf.mxu0
    %v285 = vadd.f32 0.0, %v284
    %v286 = vpop.f32.mrf.mxu0
    %v287 = vadd.f32 0.0, %v286
    %288 = vmatmul.bf16.gmra.mxu0 %v204
    %v289 = vpop.f32.mrf.mxu0
    %v290 = vadd.f32 0.0, %v289
    %v291 = vpop.f32.mrf.mxu0
    %v292 = vadd.f32 0.0, %v291
    %293 = vmatmul.bf16.gmra.mxu0 %v205
    %v294 = vpop.f32.mrf.mxu0
    %v295 = vadd.f32 0.0, %v294
    %v296 = vpop.f32.mrf.mxu0
    %v297 = vadd.f32 0.0, %v296
    %298 = vmatmul.bf16.gmra.mxu0 %v206
    %v299 = vpop.f32.mrf.mxu0
    %v300 = vadd.f32 0.0, %v299
    %v301 = vpop.f32.mrf.mxu0
    %v302 = vadd.f32 0.0, %v301
    %303 = vmatmul.bf16.gmra.mxu0 %v207
    %v304 = vpop.f32.mrf.mxu0
    %v305 = vadd.f32 0.0, %v304
    %v306 = vpop.f32.mrf.mxu0
    %v307 = vadd.f32 0.0, %v306
    %308 = vmatmul.bf16.gmra.mxu0 %v208
    %v309 = vpop.f32.mrf.mxu0
    %v310 = vadd.f32 0.0, %v309
    %v311 = vpop.f32.mrf.mxu0
    %v312 = vadd.f32 0.0, %v311
    %313 = vdwg.mxu0
    %v314 = vpack.c.bf16 %v277, %v275
    %v315 = vpack.c.bf16 %v282, %v280
    %v316 = vpack.c.bf16 %v287, %v285
    %v317 = vpack.c.bf16 %v292, %v290
    %v318 = vpack.c.bf16 %v297, %v295
    %v319 = vpack.c.bf16 %v302, %v300
    %v320 = vpack.c.bf16 %v307, %v305
    %v321 = vpack.c.bf16 %v312, %v310
    %v323 = vperm.slane %v168, 0
    %v341 = vunpack.c.l.b16 %v152
    %v342 = vunpack.c.l.b16 %v153
    %v343 = vunpack.c.l.b16 %v154
    %v344 = vunpack.c.l.b16 %v155
    %v345 = vunpack.c.l.b16 %v156
    %v346 = vunpack.c.l.b16 %v157
    %v347 = vunpack.c.l.b16 %v158
    %v348 = vunpack.c.l.b16 %v159
    %v349 = vunpack.c.l.b16 %v160
    %v350 = vunpack.c.l.b16 %v161
    %v351 = vunpack.c.l.b16 %v162
    %v352 = vunpack.c.l.b16 %v163
    %v353 = vunpack.c.l.b16 %v164
    %v354 = vunpack.c.l.b16 %v165
    %v355 = vunpack.c.l.b16 %v166
    %v356 = vunpack.c.l.b16 %v167
    %v357 = vpack.c.b16 %v342, %v341
    %v358 = vpack.c.b16 %v344, %v343
    %v359 = vpack.c.b16 %v346, %v345
    %v360 = vpack.c.b16 %v348, %v347
    %v361 = vpack.c.b16 %v350, %v349
    %v362 = vpack.c.b16 %v352, %v351
    %v363 = vpack.c.b16 %v354, %v353
    %v364 = vpack.c.b16 %v356, %v355
    %373 = vmatpush.bf16.msra.mxu0 %v364
    %374 = vmatpush.bf16.msra.mxu0 %v363
    %375 = vmatpush.bf16.msra.mxu0 %v362
    %376 = vmatpush.bf16.msra.mxu0 %v361
    %377 = vmatpush.bf16.msra.mxu0 %v360
    %378 = vmatpush.bf16.msra.mxu0 %v359
    %379 = vmatpush.bf16.msra.mxu0 %v358
    %380 = vmatpush.bf16.msra.mxu0 %v357
    %381 = vmatmul.bf16.gmra.mxu0 %v314
    %v382 = vpop.f32.mrf.mxu0
    %v383 = vadd.f32 %v323, %v382
    %v384 = vpop.f32.mrf.mxu0
    %v385 = vadd.f32 %v323, %v384
    %386 = vmatmul.bf16.gmra.mxu0 %v315
    %v387 = vpop.f32.mrf.mxu0
    %v388 = vadd.f32 %v323, %v387
    %v389 = vpop.f32.mrf.mxu0
    %v390 = vadd.f32 %v323, %v389
    %391 = vmatmul.bf16.gmra.mxu0 %v316
    %v392 = vpop.f32.mrf.mxu0
    %v393 = vadd.f32 %v323, %v392
    %v394 = vpop.f32.mrf.mxu0
    %v395 = vadd.f32 %v323, %v394
    %396 = vmatmul.bf16.gmra.mxu0 %v317
    %v397 = vpop.f32.mrf.mxu0
    %v398 = vadd.f32 %v323, %v397
    %v399 = vpop.f32.mrf.mxu0
    %v400 = vadd.f32 %v323, %v399
    %401 = vmatmul.bf16.gmra.mxu0 %v318
    %v402 = vpop.f32.mrf.mxu0
    %v403 = vadd.f32 %v323, %v402
    %v404 = vpop.f32.mrf.mxu0
    %v405 = vadd.f32 %v323, %v404
    %406 = vmatmul.bf16.gmra.mxu0 %v319
    %v407 = vpop.f32.mrf.mxu0
    %v408 = vadd.f32 %v323, %v407
    %v409 = vpop.f32.mrf.mxu0
    %v410 = vadd.f32 %v323, %v409
    %411 = vmatmul.bf16.gmra.mxu0 %v320
    %v412 = vpop.f32.mrf.mxu0
    %v413 = vadd.f32 %v323, %v412
    %v414 = vpop.f32.mrf.mxu0
    %v415 = vadd.f32 %v323, %v414
    %416 = vmatmul.bf16.gmra.mxu0 %v321
    %v417 = vpop.f32.mrf.mxu0
    %v418 = vadd.f32 %v323, %v417
    %v419 = vpop.f32.mrf.mxu0
    %v420 = vadd.f32 %v323, %v419
    %421 = vdwg.mxu0
    %v422 = vld [vmem:[%s4] sm:$0x1]
    %v423 = vld [vmem:[%s5] sm:$0x1]
    %v424 = vlaneseq
    %v425 = vand.u32 %v424, 127
    %vm426 = vcmp.lt.s32.totalorder %v425, 64
    %v427 = vsel %vm426, %v383, 0.0
    %v428 = vsel %vm426, %v385, 0.0
    %v429 = vsel %vm426, %v388, 0.0
    %v430 = vsel %vm426, %v390, 0.0
    %v431 = vsel %vm426, %v393, 0.0
    %v432 = vsel %vm426, %v395, 0.0
    %v433 = vsel %vm426, %v398, 0.0
    %v434 = vsel %vm426, %v400, 0.0
    %v435 = vsel %vm426, %v403, 0.0
    %v436 = vsel %vm426, %v405, 0.0
    %v437 = vsel %vm426, %v408, 0.0
    %v438 = vsel %vm426, %v410, 0.0
    %v439 = vsel %vm426, %v413, 0.0
    %v440 = vsel %vm426, %v415, 0.0
    %v441 = vsel %vm426, %v418, 0.0
    %v442 = vsel %vm426, %v420, 0.0
    %443 = vadd.xlane.f32.xlu0 %v427
    %v444 = vpop.xlane.xlu0 %443
    %445 = vadd.xlane.f32.xlu0 %v428
    %v446 = vpop.xlane.xlu0 %445
    %447 = vadd.xlane.f32.xlu0 %v429
    %v448 = vpop.xlane.xlu0 %447
    %449 = vadd.xlane.f32.xlu0 %v430
    %v450 = vpop.xlane.xlu0 %449
    %451 = vadd.xlane.f32.xlu0 %v431
    %v452 = vpop.xlane.xlu0 %451
    %453 = vadd.xlane.f32.xlu0 %v432
    %v454 = vpop.xlane.xlu0 %453
    %455 = vadd.xlane.f32.xlu0 %v433
    %v456 = vpop.xlane.xlu0 %455
    %457 = vadd.xlane.f32.xlu0 %v434
    %v458 = vpop.xlane.xlu0 %457
    %459 = vadd.xlane.f32.xlu0 %v435
    %v460 = vpop.xlane.xlu0 %459
    %461 = vadd.xlane.f32.xlu0 %v436
    %v462 = vpop.xlane.xlu0 %461
    %463 = vadd.xlane.f32.xlu0 %v437
    %v464 = vpop.xlane.xlu0 %463
    %465 = vadd.xlane.f32.xlu0 %v438
    %v466 = vpop.xlane.xlu0 %465
    %467 = vadd.xlane.f32.xlu0 %v439
    %v468 = vpop.xlane.xlu0 %467
    %469 = vadd.xlane.f32.xlu0 %v440
    %v470 = vpop.xlane.xlu0 %469
    %471 = vadd.xlane.f32.xlu0 %v441
    %v472 = vpop.xlane.xlu0 %471
    %473 = vadd.xlane.f32.xlu0 %v442
    %v474 = vpop.xlane.xlu0 %473
    %v475 = vmul.f32 %v444, 0.015625
    %v476 = vmul.f32 %v446, 0.015625
    %v477 = vmul.f32 %v448, 0.015625
    %v478 = vmul.f32 %v450, 0.015625
    %v479 = vmul.f32 %v452, 0.015625
    %v480 = vmul.f32 %v454, 0.015625
    %v481 = vmul.f32 %v456, 0.015625
    %v482 = vmul.f32 %v458, 0.015625
    %v483 = vmul.f32 %v460, 0.015625
    %v484 = vmul.f32 %v462, 0.015625
    %v485 = vmul.f32 %v464, 0.015625
    %v486 = vmul.f32 %v466, 0.015625
    %v487 = vmul.f32 %v468, 0.015625
    %v488 = vmul.f32 %v470, 0.015625
    %v489 = vmul.f32 %v472, 0.015625
    %v490 = vmul.f32 %v474, 0.015625
    %v491 = vsub.f32 %v383, %v475
    %v492 = vsub.f32 %v385, %v476
    %v493 = vsub.f32 %v388, %v477
    %v494 = vsub.f32 %v390, %v478
    %v495 = vsub.f32 %v393, %v479
    %v496 = vsub.f32 %v395, %v480
    %v497 = vsub.f32 %v398, %v481
    %v498 = vsub.f32 %v400, %v482
    %v499 = vsub.f32 %v403, %v483
    %v500 = vsub.f32 %v405, %v484
    %v501 = vsub.f32 %v408, %v485
    %v502 = vsub.f32 %v410, %v486
    %v503 = vsub.f32 %v413, %v487
    %v504 = vsub.f32 %v415, %v488
    %v505 = vsub.f32 %v418, %v489
    %v506 = vsub.f32 %v420, %v490
    %v507 = vmul.f32 %v491, %v491
    %v508 = vmul.f32 %v492, %v492
    %v509 = vmul.f32 %v493, %v493
    %v510 = vmul.f32 %v494, %v494
    %v511 = vmul.f32 %v495, %v495
    %v512 = vmul.f32 %v496, %v496
    %v513 = vmul.f32 %v497, %v497
    %v514 = vmul.f32 %v498, %v498
    %v515 = vmul.f32 %v499, %v499
    %v516 = vmul.f32 %v500, %v500
    %v517 = vmul.f32 %v501, %v501
    %v518 = vmul.f32 %v502, %v502
    %v519 = vmul.f32 %v503, %v503
    %v520 = vmul.f32 %v504, %v504
    %v521 = vmul.f32 %v505, %v505
    %v522 = vmul.f32 %v506, %v506
    %v523 = vsel %vm426, %v507, 0.0
    %v524 = vsel %vm426, %v508, 0.0
    %v525 = vsel %vm426, %v509, 0.0
    %v526 = vsel %vm426, %v510, 0.0
    %v527 = vsel %vm426, %v511, 0.0
    %v528 = vsel %vm426, %v512, 0.0
    %v529 = vsel %vm426, %v513, 0.0
    %v530 = vsel %vm426, %v514, 0.0
    %v531 = vsel %vm426, %v515, 0.0
    %v532 = vsel %vm426, %v516, 0.0
    %v533 = vsel %vm426, %v517, 0.0
    %v534 = vsel %vm426, %v518, 0.0
    %v535 = vsel %vm426, %v519, 0.0
    %v536 = vsel %vm426, %v520, 0.0
    %v537 = vsel %vm426, %v521, 0.0
    %v538 = vsel %vm426, %v522, 0.0
    %539 = vadd.xlane.f32.xlu0 %v523
    %v540 = vpop.xlane.xlu0 %539
    %541 = vadd.xlane.f32.xlu0 %v524
    %v542 = vpop.xlane.xlu0 %541
    %543 = vadd.xlane.f32.xlu0 %v525
    %v544 = vpop.xlane.xlu0 %543
    %545 = vadd.xlane.f32.xlu0 %v526
    %v546 = vpop.xlane.xlu0 %545
    %547 = vadd.xlane.f32.xlu0 %v527
    %v548 = vpop.xlane.xlu0 %547
    %549 = vadd.xlane.f32.xlu0 %v528
    %v550 = vpop.xlane.xlu0 %549
    %551 = vadd.xlane.f32.xlu0 %v529
    %v552 = vpop.xlane.xlu0 %551
    %553 = vadd.xlane.f32.xlu0 %v530
    %v554 = vpop.xlane.xlu0 %553
    %555 = vadd.xlane.f32.xlu0 %v531
    %v556 = vpop.xlane.xlu0 %555
    %557 = vadd.xlane.f32.xlu0 %v532
    %v558 = vpop.xlane.xlu0 %557
    %559 = vadd.xlane.f32.xlu0 %v533
    %v560 = vpop.xlane.xlu0 %559
    %561 = vadd.xlane.f32.xlu0 %v534
    %v562 = vpop.xlane.xlu0 %561
    %563 = vadd.xlane.f32.xlu0 %v535
    %v564 = vpop.xlane.xlu0 %563
    %565 = vadd.xlane.f32.xlu0 %v536
    %v566 = vpop.xlane.xlu0 %565
    %567 = vadd.xlane.f32.xlu0 %v537
    %v568 = vpop.xlane.xlu0 %567
    %569 = vadd.xlane.f32.xlu0 %v538
    %v570 = vpop.xlane.xlu0 %569
    %v571 = vmul.f32 %v540, 0.015625
    %v572 = vmul.f32 %v542, 0.015625
    %v573 = vmul.f32 %v544, 0.015625
    %v574 = vmul.f32 %v546, 0.015625
    %v575 = vmul.f32 %v548, 0.015625
    %v576 = vmul.f32 %v550, 0.015625
    %v577 = vmul.f32 %v552, 0.015625
    %v578 = vmul.f32 %v554, 0.015625
    %v579 = vmul.f32 %v556, 0.015625
    %v580 = vmul.f32 %v558, 0.015625
    %v581 = vmul.f32 %v560, 0.015625
    %v582 = vmul.f32 %v562, 0.015625
    %v583 = vmul.f32 %v564, 0.015625
    %v584 = vmul.f32 %v566, 0.015625
    %v585 = vmul.f32 %v568, 0.015625
    %v586 = vmul.f32 %v570, 0.015625
    %v587 = vadd.f32 %v571, 1e-05
    %v588 = vadd.f32 %v572, 1e-05
    %v589 = vadd.f32 %v573, 1e-05
    %v590 = vadd.f32 %v574, 1e-05
    %v591 = vadd.f32 %v575, 1e-05
    %v592 = vadd.f32 %v576, 1e-05
    %v593 = vadd.f32 %v577, 1e-05
    %v594 = vadd.f32 %v578, 1e-05
    %v595 = vadd.f32 %v579, 1e-05
    %v596 = vadd.f32 %v580, 1e-05
    %v597 = vadd.f32 %v581, 1e-05
    %v598 = vadd.f32 %v582, 1e-05
    %v599 = vadd.f32 %v583, 1e-05
    %v600 = vadd.f32 %v584, 1e-05
    %v601 = vadd.f32 %v585, 1e-05
    %v602 = vadd.f32 %v586, 1e-05
    %v603 = vrsqrt.pop %v587
    %v604 = vmul.f32 %v603, %v587
    %v605 = vmul.f32 %v604, %v603
    %v606 = vmul.f32 0.5, %v605
    %v607 = vsub.f32 1.5, %v606
    %v608 = vmul.f32 %v603, %v607
    %vm609 = vweird.f32 %v587
    %vm610 = vweird.f32 %v603
    %vm611 = vmor %vm609, %vm610
    %v612 = vsel %vm611, %v603, %v608
    %v613 = vrsqrt.pop %v588
    %v614 = vmul.f32 %v613, %v588
    %v615 = vmul.f32 %v614, %v613
    %v616 = vmul.f32 0.5, %v615
    %v617 = vsub.f32 1.5, %v616
    %v618 = vmul.f32 %v613, %v617
    %vm619 = vweird.f32 %v588
    %vm620 = vweird.f32 %v613
    %vm621 = vmor %vm619, %vm620
    %v622 = vsel %vm621, %v613, %v618
    %v623 = vrsqrt.pop %v589
    %v624 = vmul.f32 %v623, %v589
    %v625 = vmul.f32 %v624, %v623
    %v626 = vmul.f32 0.5, %v625
    %v627 = vsub.f32 1.5, %v626
    %v628 = vmul.f32 %v623, %v627
    %vm629 = vweird.f32 %v589
    %vm630 = vweird.f32 %v623
    %vm631 = vmor %vm629, %vm630
    %v632 = vsel %vm631, %v623, %v628
    %v633 = vrsqrt.pop %v590
    %v634 = vmul.f32 %v633, %v590
    %v635 = vmul.f32 %v634, %v633
    %v636 = vmul.f32 0.5, %v635
    %v637 = vsub.f32 1.5, %v636
    %v638 = vmul.f32 %v633, %v637
    %vm639 = vweird.f32 %v590
    %vm640 = vweird.f32 %v633
    %vm641 = vmor %vm639, %vm640
    %v642 = vsel %vm641, %v633, %v638
    %v643 = vrsqrt.pop %v591
    %v644 = vmul.f32 %v643, %v591
    %v645 = vmul.f32 %v644, %v643
    %v646 = vmul.f32 0.5, %v645
    %v647 = vsub.f32 1.5, %v646
    %v648 = vmul.f32 %v643, %v647
    %vm649 = vweird.f32 %v591
    %vm650 = vweird.f32 %v643
    %vm651 = vmor %vm649, %vm650
    %v652 = vsel %vm651, %v643, %v648
    %v653 = vrsqrt.pop %v592
    %v654 = vmul.f32 %v653, %v592
    %v655 = vmul.f32 %v654, %v653
    %v656 = vmul.f32 0.5, %v655
    %v657 = vsub.f32 1.5, %v656
    %v658 = vmul.f32 %v653, %v657
    %vm659 = vweird.f32 %v592
    %vm660 = vweird.f32 %v653
    %vm661 = vmor %vm659, %vm660
    %v662 = vsel %vm661, %v653, %v658
    %v663 = vrsqrt.pop %v593
    %v664 = vmul.f32 %v663, %v593
    %v665 = vmul.f32 %v664, %v663
    %v666 = vmul.f32 0.5, %v665
    %v667 = vsub.f32 1.5, %v666
    %v668 = vmul.f32 %v663, %v667
    %vm669 = vweird.f32 %v593
    %vm670 = vweird.f32 %v663
    %vm671 = vmor %vm669, %vm670
    %v672 = vsel %vm671, %v663, %v668
    %v673 = vrsqrt.pop %v594
    %v674 = vmul.f32 %v673, %v594
    %v675 = vmul.f32 %v674, %v673
    %v676 = vmul.f32 0.5, %v675
    %v677 = vsub.f32 1.5, %v676
    %v678 = vmul.f32 %v673, %v677
    %vm679 = vweird.f32 %v594
    %vm680 = vweird.f32 %v673
    %vm681 = vmor %vm679, %vm680
    %v682 = vsel %vm681, %v673, %v678
    %v683 = vrsqrt.pop %v595
    %v684 = vmul.f32 %v683, %v595
    %v685 = vmul.f32 %v684, %v683
    %v686 = vmul.f32 0.5, %v685
    %v687 = vsub.f32 1.5, %v686
    %v688 = vmul.f32 %v683, %v687
    %vm689 = vweird.f32 %v595
    %vm690 = vweird.f32 %v683
    %vm691 = vmor %vm689, %vm690
    %v692 = vsel %vm691, %v683, %v688
    %v693 = vrsqrt.pop %v596
    %v694 = vmul.f32 %v693, %v596
    %v695 = vmul.f32 %v694, %v693
    %v696 = vmul.f32 0.5, %v695
    %v697 = vsub.f32 1.5, %v696
    %v698 = vmul.f32 %v693, %v697
    %vm699 = vweird.f32 %v596
    %vm700 = vweird.f32 %v693
    %vm701 = vmor %vm699, %vm700
    %v702 = vsel %vm701, %v693, %v698
    %v703 = vrsqrt.pop %v597
    %v704 = vmul.f32 %v703, %v597
    %v705 = vmul.f32 %v704, %v703
    %v706 = vmul.f32 0.5, %v705
    %v707 = vsub.f32 1.5, %v706
    %v708 = vmul.f32 %v703, %v707
    %vm709 = vweird.f32 %v597
    %vm710 = vweird.f32 %v703
    %vm711 = vmor %vm709, %vm710
    %v712 = vsel %vm711, %v703, %v708
    %v713 = vrsqrt.pop %v598
    %v714 = vmul.f32 %v713, %v598
    %v715 = vmul.f32 %v714, %v713
    %v716 = vmul.f32 0.5, %v715
    %v717 = vsub.f32 1.5, %v716
    %v718 = vmul.f32 %v713, %v717
    %vm719 = vweird.f32 %v598
    %vm720 = vweird.f32 %v713
    %vm721 = vmor %vm719, %vm720
    %v722 = vsel %vm721, %v713, %v718
    %v723 = vrsqrt.pop %v599
    %v724 = vmul.f32 %v723, %v599
    %v725 = vmul.f32 %v724, %v723
    %v726 = vmul.f32 0.5, %v725
    %v727 = vsub.f32 1.5, %v726
    %v728 = vmul.f32 %v723, %v727
    %vm729 = vweird.f32 %v599
    %vm730 = vweird.f32 %v723
    %vm731 = vmor %vm729, %vm730
    %v732 = vsel %vm731, %v723, %v728
    %v733 = vrsqrt.pop %v600
    %v734 = vmul.f32 %v733, %v600
    %v735 = vmul.f32 %v734, %v733
    %v736 = vmul.f32 0.5, %v735
    %v737 = vsub.f32 1.5, %v736
    %v738 = vmul.f32 %v733, %v737
    %vm739 = vweird.f32 %v600
    %vm740 = vweird.f32 %v733
    %vm741 = vmor %vm739, %vm740
    %v742 = vsel %vm741, %v733, %v738
    %v743 = vrsqrt.pop %v601
    %v744 = vmul.f32 %v743, %v601
    %v745 = vmul.f32 %v744, %v743
    %v746 = vmul.f32 0.5, %v745
    %v747 = vsub.f32 1.5, %v746
    %v748 = vmul.f32 %v743, %v747
    %vm749 = vweird.f32 %v601
    %vm750 = vweird.f32 %v743
    %vm751 = vmor %vm749, %vm750
    %v752 = vsel %vm751, %v743, %v748
    %v753 = vrsqrt.pop %v602
    %v754 = vmul.f32 %v753, %v602
    %v755 = vmul.f32 %v754, %v753
    %v756 = vmul.f32 0.5, %v755
    %v757 = vsub.f32 1.5, %v756
    %v758 = vmul.f32 %v753, %v757
    %vm759 = vweird.f32 %v602
    %vm760 = vweird.f32 %v753
    %vm761 = vmor %vm759, %vm760
    %v762 = vsel %vm761, %v753, %v758
    %v763 = vmul.f32 %v491, %v612
    %v764 = vmul.f32 %v492, %v622
    %v765 = vmul.f32 %v493, %v632
    %v766 = vmul.f32 %v494, %v642
    %v767 = vmul.f32 %v495, %v652
    %v768 = vmul.f32 %v496, %v662
    %v769 = vmul.f32 %v497, %v672
    %v770 = vmul.f32 %v498, %v682
    %v771 = vmul.f32 %v499, %v692
    %v772 = vmul.f32 %v500, %v702
    %v773 = vmul.f32 %v501, %v712
    %v774 = vmul.f32 %v502, %v722
    %v775 = vmul.f32 %v503, %v732
    %v776 = vmul.f32 %v504, %v742
    %v777 = vmul.f32 %v505, %v752
    %v778 = vmul.f32 %v506, %v762
    %v780 = vperm.slane %v422, 0
    %v782 = vmul.f32 %v763, %v780
    %v783 = vmul.f32 %v764, %v780
    %v784 = vmul.f32 %v765, %v780
    %v785 = vmul.f32 %v766, %v780
    %v786 = vmul.f32 %v767, %v780
    %v787 = vmul.f32 %v768, %v780
    %v788 = vmul.f32 %v769, %v780
    %v789 = vmul.f32 %v770, %v780
    %v790 = vmul.f32 %v771, %v780
    %v791 = vmul.f32 %v772, %v780
    %v792 = vmul.f32 %v773, %v780
    %v793 = vmul.f32 %v774, %v780
    %v794 = vmul.f32 %v775, %v780
    %v795 = vmul.f32 %v776, %v780
    %v796 = vmul.f32 %v777, %v780
    %v797 = vmul.f32 %v778, %v780
    %v799 = vperm.slane %v423, 0
    %v801 = vadd.f32 %v782, %v799
    %v802 = vadd.f32 %v783, %v799
    %v803 = vadd.f32 %v784, %v799
    %v804 = vadd.f32 %v785, %v799
    %v805 = vadd.f32 %v786, %v799
    %v806 = vadd.f32 %v787, %v799
    %v807 = vadd.f32 %v788, %v799
    %v808 = vadd.f32 %v789, %v799
    %v809 = vadd.f32 %v790, %v799
    %v810 = vadd.f32 %v791, %v799
    %v811 = vadd.f32 %v792, %v799
    %v812 = vadd.f32 %v793, %v799
    %v813 = vadd.f32 %v794, %v799
    %v814 = vadd.f32 %v795, %v799
    %v815 = vadd.f32 %v796, %v799
    %v816 = vadd.f32 %v797, %v799
    %v817 = vmax.f32 %v801, 0.0
    %v818 = vmax.f32 %v802, 0.0
    %v819 = vmax.f32 %v803, 0.0
    %v820 = vmax.f32 %v804, 0.0
    %v821 = vmax.f32 %v805, 0.0
    %v822 = vmax.f32 %v806, 0.0
    %v823 = vmax.f32 %v807, 0.0
    %v824 = vmax.f32 %v808, 0.0
    %v825 = vmax.f32 %v809, 0.0
    %v826 = vmax.f32 %v810, 0.0
    %v827 = vmax.f32 %v811, 0.0
    %v828 = vmax.f32 %v812, 0.0
    %v829 = vmax.f32 %v813, 0.0
    %v830 = vmax.f32 %v814, 0.0
    %v831 = vmax.f32 %v815, 0.0
    %v832 = vmax.f32 %v816, 0.0
    %v833 = vpack.c.bf16 %v818, %v817
    %v834 = vpack.c.bf16 %v820, %v819
    %v835 = vpack.c.bf16 %v822, %v821
    %v836 = vpack.c.bf16 %v824, %v823
    %v837 = vpack.c.bf16 %v826, %v825
    %v838 = vpack.c.bf16 %v828, %v827
    %v839 = vpack.c.bf16 %v830, %v829
    %v840 = vpack.c.bf16 %v832, %v831
    %v841 = vld [vmem:[#allocation8] sm:$0xf]
    %v842 = vld [vmem:[#allocation8 + $0x4] sm:$0xf]
    %v843 = vld [vmem:[#allocation8 + $0x8] sm:$0xf]
    %v844 = vld [vmem:[#allocation8 + $0xc] sm:$0xf]
    %v845 = vld [vmem:[#allocation8 + $0x10] sm:$0xf]
    %v846 = vld [vmem:[#allocation8 + $0x14] sm:$0xf]
    %v847 = vld [vmem:[#allocation8 + $0x18] sm:$0xf]
    %v848 = vld [vmem:[#allocation8 + $0x1c] sm:$0xf]
    %v849 = vld [vmem:[#allocation8 + $0x20] sm:$0xf]
    %v850 = vld [vmem:[#allocation8 + $0x24] sm:$0xf]
    %v851 = vld [vmem:[#allocation8 + $0x28] sm:$0xf]
    %v852 = vld [vmem:[#allocation8 + $0x2c] sm:$0xf]
    %v853 = vld [vmem:[#allocation8 + $0x30] sm:$0xf]
    %v854 = vld [vmem:[#allocation8 + $0x34] sm:$0xf]
    %v855 = vld [vmem:[#allocation8 + $0x38] sm:$0xf]
    %v856 = vld [vmem:[#allocation8 + $0x3c] sm:$0xf]
    %v857 = vld [vmem:[%s7] sm:$0x1]
    %858 = vmatpush.bf16.msra.mxu0 %v840
    %859 = vmatpush.bf16.msra.mxu0 %v839
    %860 = vmatpush.bf16.msra.mxu0 %v838
    %861 = vmatpush.bf16.msra.mxu0 %v837
    %862 = vmatpush.bf16.msra.mxu0 %v836
    %863 = vmatpush.bf16.msra.mxu0 %v835
    %864 = vmatpush.bf16.msra.mxu0 %v834
    %865 = vmatpush.bf16.msra.mxu0 %v833
    %866 = vmatmul.bf16.gmra.mxu0 %v201
    %v867 = vpop.f32.mrf.mxu0
    %v868 = vadd.f32 0.0, %v867
    %v869 = vpop.f32.mrf.mxu0
    %v870 = vadd.f32 0.0, %v869
    %871 = vmatmul.bf16.gmra.mxu0 %v202
    %v872 = vpop.f32.mrf.mxu0
    %v873 = vadd.f32 0.0, %v872
    %v874 = vpop.f32.mrf.mxu0
    %v875 = vadd.f32 0.0, %v874
    %876 = vmatmul.bf16.gmra.mxu0 %v203
    %v877 = vpop.f32.mrf.mxu0
    %v878 = vadd.f32 0.0, %v877
    %v879 = vpop.f32.mrf.mxu0
    %v880 = vadd.f32 0.0, %v879
    %881 = vmatmul.bf16.gmra.mxu0 %v204
    %v882 = vpop.f32.mrf.mxu0
    %v883 = vadd.f32 0.0, %v882
    %v884 = vpop.f32.mrf.mxu0
    %v885 = vadd.f32 0.0, %v884
    %886 = vmatmul.bf16.gmra.mxu0 %v205
    %v887 = vpop.f32.mrf.mxu0
    %v888 = vadd.f32 0.0, %v887
    %v889 = vpop.f32.mrf.mxu0
    %v890 = vadd.f32 0.0, %v889
    %891 = vmatmul.bf16.gmra.mxu0 %v206
    %v892 = vpop.f32.mrf.mxu0
    %v893 = vadd.f32 0.0, %v892
    %v894 = vpop.f32.mrf.mxu0
    %v895 = vadd.f32 0.0, %v894
    %896 = vmatmul.bf16.gmra.mxu0 %v207
    %v897 = vpop.f32.mrf.mxu0
    %v898 = vadd.f32 0.0, %v897
    %v899 = vpop.f32.mrf.mxu0
    %v900 = vadd.f32 0.0, %v899
    %901 = vmatmul.bf16.gmra.mxu0 %v208
    %v902 = vpop.f32.mrf.mxu0
    %v903 = vadd.f32 0.0, %v902
    %v904 = vpop.f32.mrf.mxu0
    %v905 = vadd.f32 0.0, %v904
    %906 = vdwg.mxu0
    %v907 = vpack.c.bf16 %v870, %v868
    %v908 = vpack.c.bf16 %v875, %v873
    %v909 = vpack.c.bf16 %v880, %v878
    %v910 = vpack.c.bf16 %v885, %v883
    %v911 = vpack.c.bf16 %v890, %v888
    %v912 = vpack.c.bf16 %v895, %v893
    %v913 = vpack.c.bf16 %v900, %v898
    %v914 = vpack.c.bf16 %v905, %v903
    %v916 = vperm.slane %v857, 0
    %v934 = vunpack.c.l.b16 %v841
    %v935 = vunpack.c.l.b16 %v842
    %v936 = vunpack.c.l.b16 %v843
    %v937 = vunpack.c.l.b16 %v844
    %v938 = vunpack.c.l.b16 %v845
    %v939 = vunpack.c.l.b16 %v846
    %v940 = vunpack.c.l.b16 %v847
    %v941 = vunpack.c.l.b16 %v848
    %v942 = vunpack.c.l.b16 %v849
    %v943 = vunpack.c.l.b16 %v850
    %v944 = vunpack.c.l.b16 %v851
    %v945 = vunpack.c.l.b16 %v852
    %v946 = vunpack.c.l.b16 %v853
    %v947 = vunpack.c.l.b16 %v854
    %v948 = vunpack.c.l.b16 %v855
    %v949 = vunpack.c.l.b16 %v856
    %v950 = vpack.c.b16 %v935, %v934
    %v951 = vpack.c.b16 %v937, %v936
    %v952 = vpack.c.b16 %v939, %v938
    %v953 = vpack.c.b16 %v941, %v940
    %v954 = vpack.c.b16 %v943, %v942
    %v955 = vpack.c.b16 %v945, %v944
    %v956 = vpack.c.b16 %v947, %v946
    %v957 = vpack.c.b16 %v949, %v948
    %966 = vmatpush.bf16.msra.mxu0 %v957
    %967 = vmatpush.bf16.msra.mxu0 %v956
    %968 = vmatpush.bf16.msra.mxu0 %v955
    %969 = vmatpush.bf16.msra.mxu0 %v954
    %970 = vmatpush.bf16.msra.mxu0 %v953
    %971 = vmatpush.bf16.msra.mxu0 %v952
    %972 = vmatpush.bf16.msra.mxu0 %v951
    %973 = vmatpush.bf16.msra.mxu0 %v950
    %974 = vmatmul.bf16.gmra.mxu0 %v907
    %v975 = vpop.f32.mrf.mxu0
    %v976 = vadd.f32 %v916, %v975
    %v977 = vpop.f32.mrf.mxu0
    %v978 = vadd.f32 %v916, %v977
    %979 = vmatmul.bf16.gmra.mxu0 %v908
    %v980 = vpop.f32.mrf.mxu0
    %v981 = vadd.f32 %v916, %v980
    %v982 = vpop.f32.mrf.mxu0
    %v983 = vadd.f32 %v916, %v982
    %984 = vmatmul.bf16.gmra.mxu0 %v909
    %v985 = vpop.f32.mrf.mxu0
    %v986 = vadd.f32 %v916, %v985
    %v987 = vpop.f32.mrf.mxu0
    %v988 = vadd.f32 %v916, %v987
    %989 = vmatmul.bf16.gmra.mxu0 %v910
    %v990 = vpop.f32.mrf.mxu0
    %v991 = vadd.f32 %v916, %v990
    %v992 = vpop.f32.mrf.mxu0
    %v993 = vadd.f32 %v916, %v992
    %994 = vmatmul.bf16.gmra.mxu0 %v911
    %v995 = vpop.f32.mrf.mxu0
    %v996 = vadd.f32 %v916, %v995
    %v997 = vpop.f32.mrf.mxu0
    %v998 = vadd.f32 %v916, %v997
    %999 = vmatmul.bf16.gmra.mxu0 %v912
    %v1000 = vpop.f32.mrf.mxu0
    %v1001 = vadd.f32 %v916, %v1000
    %v1002 = vpop.f32.mrf.mxu0
    %v1003 = vadd.f32 %v916, %v1002
    %1004 = vmatmul.bf16.gmra.mxu0 %v913
    %v1005 = vpop.f32.mrf.mxu0
    %v1006 = vadd.f32 %v916, %v1005
    %v1007 = vpop.f32.mrf.mxu0
    %v1008 = vadd.f32 %v916, %v1007
    %1009 = vmatmul.bf16.gmra.mxu0 %v914
    %v1010 = vpop.f32.mrf.mxu0
    %v1011 = vadd.f32 %v916, %v1010
    %v1012 = vpop.f32.mrf.mxu0
    %v1013 = vadd.f32 %v916, %v1012
    %1014 = vdwg.mxu0
    %v1015 = vld [vmem:[%s8] sm:$0x1]
    %v1016 = vld [vmem:[%s9] sm:$0x1]
    %v1017 = vsel %vm426, %v976, 0.0
    %v1018 = vsel %vm426, %v978, 0.0
    %v1019 = vsel %vm426, %v981, 0.0
    %v1020 = vsel %vm426, %v983, 0.0
    %v1021 = vsel %vm426, %v986, 0.0
    %v1022 = vsel %vm426, %v988, 0.0
    %v1023 = vsel %vm426, %v991, 0.0
    %v1024 = vsel %vm426, %v993, 0.0
    %v1025 = vsel %vm426, %v996, 0.0
    %v1026 = vsel %vm426, %v998, 0.0
    %v1027 = vsel %vm426, %v1001, 0.0
    %v1028 = vsel %vm426, %v1003, 0.0
    %v1029 = vsel %vm426, %v1006, 0.0
    %v1030 = vsel %vm426, %v1008, 0.0
    %v1031 = vsel %vm426, %v1011, 0.0
    %v1032 = vsel %vm426, %v1013, 0.0
    %1033 = vadd.xlane.f32.xlu0 %v1017
    %v1034 = vpop.xlane.xlu0 %1033
    %1035 = vadd.xlane.f32.xlu0 %v1018
    %v1036 = vpop.xlane.xlu0 %1035
    %1037 = vadd.xlane.f32.xlu0 %v1019
    %v1038 = vpop.xlane.xlu0 %1037
    %1039 = vadd.xlane.f32.xlu0 %v1020
    %v1040 = vpop.xlane.xlu0 %1039
    %1041 = vadd.xlane.f32.xlu0 %v1021
    %v1042 = vpop.xlane.xlu0 %1041
    %1043 = vadd.xlane.f32.xlu0 %v1022
    %v1044 = vpop.xlane.xlu0 %1043
    %1045 = vadd.xlane.f32.xlu0 %v1023
    %v1046 = vpop.xlane.xlu0 %1045
    %1047 = vadd.xlane.f32.xlu0 %v1024
    %v1048 = vpop.xlane.xlu0 %1047
    %1049 = vadd.xlane.f32.xlu0 %v1025
    %v1050 = vpop.xlane.xlu0 %1049
    %1051 = vadd.xlane.f32.xlu0 %v1026
    %v1052 = vpop.xlane.xlu0 %1051
    %1053 = vadd.xlane.f32.xlu0 %v1027
    %v1054 = vpop.xlane.xlu0 %1053
    %1055 = vadd.xlane.f32.xlu0 %v1028
    %v1056 = vpop.xlane.xlu0 %1055
    %1057 = vadd.xlane.f32.xlu0 %v1029
    %v1058 = vpop.xlane.xlu0 %1057
    %1059 = vadd.xlane.f32.xlu0 %v1030
    %v1060 = vpop.xlane.xlu0 %1059
    %1061 = vadd.xlane.f32.xlu0 %v1031
    %v1062 = vpop.xlane.xlu0 %1061
    %1063 = vadd.xlane.f32.xlu0 %v1032
    %v1064 = vpop.xlane.xlu0 %1063
    %v1065 = vmul.f32 %v1034, 0.015625
    %v1066 = vmul.f32 %v1036, 0.015625
    %v1067 = vmul.f32 %v1038, 0.015625
    %v1068 = vmul.f32 %v1040, 0.015625
    %v1069 = vmul.f32 %v1042, 0.015625
    %v1070 = vmul.f32 %v1044, 0.015625
    %v1071 = vmul.f32 %v1046, 0.015625
    %v1072 = vmul.f32 %v1048, 0.015625
    %v1073 = vmul.f32 %v1050, 0.015625
    %v1074 = vmul.f32 %v1052, 0.015625
    %v1075 = vmul.f32 %v1054, 0.015625
    %v1076 = vmul.f32 %v1056, 0.015625
    %v1077 = vmul.f32 %v1058, 0.015625
    %v1078 = vmul.f32 %v1060, 0.015625
    %v1079 = vmul.f32 %v1062, 0.015625
    %v1080 = vmul.f32 %v1064, 0.015625
    %v1081 = vsub.f32 %v976, %v1065
    %v1082 = vsub.f32 %v978, %v1066
    %v1083 = vsub.f32 %v981, %v1067
    %v1084 = vsub.f32 %v983, %v1068
    %v1085 = vsub.f32 %v986, %v1069
    %v1086 = vsub.f32 %v988, %v1070
    %v1087 = vsub.f32 %v991, %v1071
    %v1088 = vsub.f32 %v993, %v1072
    %v1089 = vsub.f32 %v996, %v1073
    %v1090 = vsub.f32 %v998, %v1074
    %v1091 = vsub.f32 %v1001, %v1075
    %v1092 = vsub.f32 %v1003, %v1076
    %v1093 = vsub.f32 %v1006, %v1077
    %v1094 = vsub.f32 %v1008, %v1078
    %v1095 = vsub.f32 %v1011, %v1079
    %v1096 = vsub.f32 %v1013, %v1080
    %v1097 = vmul.f32 %v1081, %v1081
    %v1098 = vmul.f32 %v1082, %v1082
    %v1099 = vmul.f32 %v1083, %v1083
    %v1100 = vmul.f32 %v1084, %v1084
    %v1101 = vmul.f32 %v1085, %v1085
    %v1102 = vmul.f32 %v1086, %v1086
    %v1103 = vmul.f32 %v1087, %v1087
    %v1104 = vmul.f32 %v1088, %v1088
    %v1105 = vmul.f32 %v1089, %v1089
    %v1106 = vmul.f32 %v1090, %v1090
    %v1107 = vmul.f32 %v1091, %v1091
    %v1108 = vmul.f32 %v1092, %v1092
    %v1109 = vmul.f32 %v1093, %v1093
    %v1110 = vmul.f32 %v1094, %v1094
    %v1111 = vmul.f32 %v1095, %v1095
    %v1112 = vmul.f32 %v1096, %v1096
    %v1113 = vsel %vm426, %v1097, 0.0
    %v1114 = vsel %vm426, %v1098, 0.0
    %v1115 = vsel %vm426, %v1099, 0.0
    %v1116 = vsel %vm426, %v1100, 0.0
    %v1117 = vsel %vm426, %v1101, 0.0
    %v1118 = vsel %vm426, %v1102, 0.0
    %v1119 = vsel %vm426, %v1103, 0.0
    %v1120 = vsel %vm426, %v1104, 0.0
    %v1121 = vsel %vm426, %v1105, 0.0
    %v1122 = vsel %vm426, %v1106, 0.0
    %v1123 = vsel %vm426, %v1107, 0.0
    %v1124 = vsel %vm426, %v1108, 0.0
    %v1125 = vsel %vm426, %v1109, 0.0
    %v1126 = vsel %vm426, %v1110, 0.0
    %v1127 = vsel %vm426, %v1111, 0.0
    %v1128 = vsel %vm426, %v1112, 0.0
    %1129 = vadd.xlane.f32.xlu0 %v1113
    %v1130 = vpop.xlane.xlu0 %1129
    %1131 = vadd.xlane.f32.xlu0 %v1114
    %v1132 = vpop.xlane.xlu0 %1131
    %1133 = vadd.xlane.f32.xlu0 %v1115
    %v1134 = vpop.xlane.xlu0 %1133
    %1135 = vadd.xlane.f32.xlu0 %v1116
    %v1136 = vpop.xlane.xlu0 %1135
    %1137 = vadd.xlane.f32.xlu0 %v1117
    %v1138 = vpop.xlane.xlu0 %1137
    %1139 = vadd.xlane.f32.xlu0 %v1118
    %v1140 = vpop.xlane.xlu0 %1139
    %1141 = vadd.xlane.f32.xlu0 %v1119
    %v1142 = vpop.xlane.xlu0 %1141
    %1143 = vadd.xlane.f32.xlu0 %v1120
    %v1144 = vpop.xlane.xlu0 %1143
    %1145 = vadd.xlane.f32.xlu0 %v1121
    %v1146 = vpop.xlane.xlu0 %1145
    %1147 = vadd.xlane.f32.xlu0 %v1122
    %v1148 = vpop.xlane.xlu0 %1147
    %1149 = vadd.xlane.f32.xlu0 %v1123
    %v1150 = vpop.xlane.xlu0 %1149
    %1151 = vadd.xlane.f32.xlu0 %v1124
    %v1152 = vpop.xlane.xlu0 %1151
    %1153 = vadd.xlane.f32.xlu0 %v1125
    %v1154 = vpop.xlane.xlu0 %1153
    %1155 = vadd.xlane.f32.xlu0 %v1126
    %v1156 = vpop.xlane.xlu0 %1155
    %1157 = vadd.xlane.f32.xlu0 %v1127
    %v1158 = vpop.xlane.xlu0 %1157
    %1159 = vadd.xlane.f32.xlu0 %v1128
    %v1160 = vpop.xlane.xlu0 %1159
    %v1161 = vmul.f32 %v1130, 0.015625
    %v1162 = vmul.f32 %v1132, 0.015625
    %v1163 = vmul.f32 %v1134, 0.015625
    %v1164 = vmul.f32 %v1136, 0.015625
    %v1165 = vmul.f32 %v1138, 0.015625
    %v1166 = vmul.f32 %v1140, 0.015625
    %v1167 = vmul.f32 %v1142, 0.015625
    %v1168 = vmul.f32 %v1144, 0.015625
    %v1169 = vmul.f32 %v1146, 0.015625
    %v1170 = vmul.f32 %v1148, 0.015625
    %v1171 = vmul.f32 %v1150, 0.015625
    %v1172 = vmul.f32 %v1152, 0.015625
    %v1173 = vmul.f32 %v1154, 0.015625
    %v1174 = vmul.f32 %v1156, 0.015625
    %v1175 = vmul.f32 %v1158, 0.015625
    %v1176 = vmul.f32 %v1160, 0.015625
    %v1177 = vadd.f32 %v1161, 1e-05
    %v1178 = vadd.f32 %v1162, 1e-05
    %v1179 = vadd.f32 %v1163, 1e-05
    %v1180 = vadd.f32 %v1164, 1e-05
    %v1181 = vadd.f32 %v1165, 1e-05
    %v1182 = vadd.f32 %v1166, 1e-05
    %v1183 = vadd.f32 %v1167, 1e-05
    %v1184 = vadd.f32 %v1168, 1e-05
    %v1185 = vadd.f32 %v1169, 1e-05
    %v1186 = vadd.f32 %v1170, 1e-05
    %v1187 = vadd.f32 %v1171, 1e-05
    %v1188 = vadd.f32 %v1172, 1e-05
    %v1189 = vadd.f32 %v1173, 1e-05
    %v1190 = vadd.f32 %v1174, 1e-05
    %v1191 = vadd.f32 %v1175, 1e-05
    %v1192 = vadd.f32 %v1176, 1e-05
    %v1193 = vrsqrt.pop %v1177
    %v1194 = vmul.f32 %v1193, %v1177
    %v1195 = vmul.f32 %v1194, %v1193
    %v1196 = vmul.f32 0.5, %v1195
    %v1197 = vsub.f32 1.5, %v1196
    %v1198 = vmul.f32 %v1193, %v1197
    %vm1199 = vweird.f32 %v1177
    %vm1200 = vweird.f32 %v1193
    %vm1201 = vmor %vm1199, %vm1200
    %v1202 = vsel %vm1201, %v1193, %v1198
    %v1203 = vrsqrt.pop %v1178
    %v1204 = vmul.f32 %v1203, %v1178
    %v1205 = vmul.f32 %v1204, %v1203
    %v1206 = vmul.f32 0.5, %v1205
    %v1207 = vsub.f32 1.5, %v1206
    %v1208 = vmul.f32 %v1203, %v1207
    %vm1209 = vweird.f32 %v1178
    %vm1210 = vweird.f32 %v1203
    %vm1211 = vmor %vm1209, %vm1210
    %v1212 = vsel %vm1211, %v1203, %v1208
    %v1213 = vrsqrt.pop %v1179
    %v1214 = vmul.f32 %v1213, %v1179
    %v1215 = vmul.f32 %v1214, %v1213
    %v1216 = vmul.f32 0.5, %v1215
    %v1217 = vsub.f32 1.5, %v1216
    %v1218 = vmul.f32 %v1213, %v1217
    %vm1219 = vweird.f32 %v1179
    %vm1220 = vweird.f32 %v1213
    %vm1221 = vmor %vm1219, %vm1220
    %v1222 = vsel %vm1221, %v1213, %v1218
    %v1223 = vrsqrt.pop %v1180
    %v1224 = vmul.f32 %v1223, %v1180
    %v1225 = vmul.f32 %v1224, %v1223
    %v1226 = vmul.f32 0.5, %v1225
    %v1227 = vsub.f32 1.5, %v1226
    %v1228 = vmul.f32 %v1223, %v1227
    %vm1229 = vweird.f32 %v1180
    %vm1230 = vweird.f32 %v1223
    %vm1231 = vmor %vm1229, %vm1230
    %v1232 = vsel %vm1231, %v1223, %v1228
    %v1233 = vrsqrt.pop %v1181
    %v1234 = vmul.f32 %v1233, %v1181
    %v1235 = vmul.f32 %v1234, %v1233
    %v1236 = vmul.f32 0.5, %v1235
    %v1237 = vsub.f32 1.5, %v1236
    %v1238 = vmul.f32 %v1233, %v1237
    %vm1239 = vweird.f32 %v1181
    %vm1240 = vweird.f32 %v1233
    %vm1241 = vmor %vm1239, %vm1240
    %v1242 = vsel %vm1241, %v1233, %v1238
    %v1243 = vrsqrt.pop %v1182
    %v1244 = vmul.f32 %v1243, %v1182
    %v1245 = vmul.f32 %v1244, %v1243
    %v1246 = vmul.f32 0.5, %v1245
    %v1247 = vsub.f32 1.5, %v1246
    %v1248 = vmul.f32 %v1243, %v1247
    %vm1249 = vweird.f32 %v1182
    %vm1250 = vweird.f32 %v1243
    %vm1251 = vmor %vm1249, %vm1250
    %v1252 = vsel %vm1251, %v1243, %v1248
    %v1253 = vrsqrt.pop %v1183
    %v1254 = vmul.f32 %v1253, %v1183
    %v1255 = vmul.f32 %v1254, %v1253
    %v1256 = vmul.f32 0.5, %v1255
    %v1257 = vsub.f32 1.5, %v1256
    %v1258 = vmul.f32 %v1253, %v1257
    %vm1259 = vweird.f32 %v1183
    %vm1260 = vweird.f32 %v1253
    %vm1261 = vmor %vm1259, %vm1260
    %v1262 = vsel %vm1261, %v1253, %v1258
    %v1263 = vrsqrt.pop %v1184
    %v1264 = vmul.f32 %v1263, %v1184
    %v1265 = vmul.f32 %v1264, %v1263
    %v1266 = vmul.f32 0.5, %v1265
    %v1267 = vsub.f32 1.5, %v1266
    %v1268 = vmul.f32 %v1263, %v1267
    %vm1269 = vweird.f32 %v1184
    %vm1270 = vweird.f32 %v1263
    %vm1271 = vmor %vm1269, %vm1270
    %v1272 = vsel %vm1271, %v1263, %v1268
    %v1273 = vrsqrt.pop %v1185
    %v1274 = vmul.f32 %v1273, %v1185
    %v1275 = vmul.f32 %v1274, %v1273
    %v1276 = vmul.f32 0.5, %v1275
    %v1277 = vsub.f32 1.5, %v1276
    %v1278 = vmul.f32 %v1273, %v1277
    %vm1279 = vweird.f32 %v1185
    %vm1280 = vweird.f32 %v1273
    %vm1281 = vmor %vm1279, %vm1280
    %v1282 = vsel %vm1281, %v1273, %v1278
    %v1283 = vrsqrt.pop %v1186
    %v1284 = vmul.f32 %v1283, %v1186
    %v1285 = vmul.f32 %v1284, %v1283
    %v1286 = vmul.f32 0.5, %v1285
    %v1287 = vsub.f32 1.5, %v1286
    %v1288 = vmul.f32 %v1283, %v1287
    %vm1289 = vweird.f32 %v1186
    %vm1290 = vweird.f32 %v1283
    %vm1291 = vmor %vm1289, %vm1290
    %v1292 = vsel %vm1291, %v1283, %v1288
    %v1293 = vrsqrt.pop %v1187
    %v1294 = vmul.f32 %v1293, %v1187
    %v1295 = vmul.f32 %v1294, %v1293
    %v1296 = vmul.f32 0.5, %v1295
    %v1297 = vsub.f32 1.5, %v1296
    %v1298 = vmul.f32 %v1293, %v1297
    %vm1299 = vweird.f32 %v1187
    %vm1300 = vweird.f32 %v1293
    %vm1301 = vmor %vm1299, %vm1300
    %v1302 = vsel %vm1301, %v1293, %v1298
    %v1303 = vrsqrt.pop %v1188
    %v1304 = vmul.f32 %v1303, %v1188
    %v1305 = vmul.f32 %v1304, %v1303
    %v1306 = vmul.f32 0.5, %v1305
    %v1307 = vsub.f32 1.5, %v1306
    %v1308 = vmul.f32 %v1303, %v1307
    %vm1309 = vweird.f32 %v1188
    %vm1310 = vweird.f32 %v1303
    %vm1311 = vmor %vm1309, %vm1310
    %v1312 = vsel %vm1311, %v1303, %v1308
    %v1313 = vrsqrt.pop %v1189
    %v1314 = vmul.f32 %v1313, %v1189
    %v1315 = vmul.f32 %v1314, %v1313
    %v1316 = vmul.f32 0.5, %v1315
    %v1317 = vsub.f32 1.5, %v1316
    %v1318 = vmul.f32 %v1313, %v1317
    %vm1319 = vweird.f32 %v1189
    %vm1320 = vweird.f32 %v1313
    %vm1321 = vmor %vm1319, %vm1320
    %v1322 = vsel %vm1321, %v1313, %v1318
    %v1323 = vrsqrt.pop %v1190
    %v1324 = vmul.f32 %v1323, %v1190
    %v1325 = vmul.f32 %v1324, %v1323
    %v1326 = vmul.f32 0.5, %v1325
    %v1327 = vsub.f32 1.5, %v1326
    %v1328 = vmul.f32 %v1323, %v1327
    %vm1329 = vweird.f32 %v1190
    %vm1330 = vweird.f32 %v1323
    %vm1331 = vmor %vm1329, %vm1330
    %v1332 = vsel %vm1331, %v1323, %v1328
    %v1333 = vrsqrt.pop %v1191
    %v1334 = vmul.f32 %v1333, %v1191
    %v1335 = vmul.f32 %v1334, %v1333
    %v1336 = vmul.f32 0.5, %v1335
    %v1337 = vsub.f32 1.5, %v1336
    %v1338 = vmul.f32 %v1333, %v1337
    %vm1339 = vweird.f32 %v1191
    %vm1340 = vweird.f32 %v1333
    %vm1341 = vmor %vm1339, %vm1340
    %v1342 = vsel %vm1341, %v1333, %v1338
    %v1343 = vrsqrt.pop %v1192
    %v1344 = vmul.f32 %v1343, %v1192
    %v1345 = vmul.f32 %v1344, %v1343
    %v1346 = vmul.f32 0.5, %v1345
    %v1347 = vsub.f32 1.5, %v1346
    %v1348 = vmul.f32 %v1343, %v1347
    %vm1349 = vweird.f32 %v1192
    %vm1350 = vweird.f32 %v1343
    %vm1351 = vmor %vm1349, %vm1350
    %v1352 = vsel %vm1351, %v1343, %v1348
    %v1353 = vmul.f32 %v1081, %v1202
    %v1354 = vmul.f32 %v1082, %v1212
    %v1355 = vmul.f32 %v1083, %v1222
    %v1356 = vmul.f32 %v1084, %v1232
    %v1357 = vmul.f32 %v1085, %v1242
    %v1358 = vmul.f32 %v1086, %v1252
    %v1359 = vmul.f32 %v1087, %v1262
    %v1360 = vmul.f32 %v1088, %v1272
    %v1361 = vmul.f32 %v1089, %v1282
    %v1362 = vmul.f32 %v1090, %v1292
    %v1363 = vmul.f32 %v1091, %v1302
    %v1364 = vmul.f32 %v1092, %v1312
    %v1365 = vmul.f32 %v1093, %v1322
    %v1366 = vmul.f32 %v1094, %v1332
    %v1367 = vmul.f32 %v1095, %v1342
    %v1368 = vmul.f32 %v1096, %v1352
    %v1370 = vperm.slane %v1015, 0
    %v1372 = vmul.f32 %v1353, %v1370
    %v1373 = vmul.f32 %v1354, %v1370
    %v1374 = vmul.f32 %v1355, %v1370
    %v1375 = vmul.f32 %v1356, %v1370
    %v1376 = vmul.f32 %v1357, %v1370
    %v1377 = vmul.f32 %v1358, %v1370
    %v1378 = vmul.f32 %v1359, %v1370
    %v1379 = vmul.f32 %v1360, %v1370
    %v1380 = vmul.f32 %v1361, %v1370
    %v1381 = vmul.f32 %v1362, %v1370
    %v1382 = vmul.f32 %v1363, %v1370
    %v1383 = vmul.f32 %v1364, %v1370
    %v1384 = vmul.f32 %v1365, %v1370
    %v1385 = vmul.f32 %v1366, %v1370
    %v1386 = vmul.f32 %v1367, %v1370
    %v1387 = vmul.f32 %v1368, %v1370
    %v1389 = vperm.slane %v1016, 0
    %v1391 = vadd.f32 %v1372, %v1389
    %v1392 = vadd.f32 %v1373, %v1389
    %v1393 = vadd.f32 %v1374, %v1389
    %v1394 = vadd.f32 %v1375, %v1389
    %v1395 = vadd.f32 %v1376, %v1389
    %v1396 = vadd.f32 %v1377, %v1389
    %v1397 = vadd.f32 %v1378, %v1389
    %v1398 = vadd.f32 %v1379, %v1389
    %v1399 = vadd.f32 %v1380, %v1389
    %v1400 = vadd.f32 %v1381, %v1389
    %v1401 = vadd.f32 %v1382, %v1389
    %v1402 = vadd.f32 %v1383, %v1389
    %v1403 = vadd.f32 %v1384, %v1389
    %v1404 = vadd.f32 %v1385, %v1389
    %v1405 = vadd.f32 %v1386, %v1389
    %v1406 = vadd.f32 %v1387, %v1389
    %v1407 = vmax.f32 %v1391, 0.0
    %v1408 = vmax.f32 %v1392, 0.0
    %v1409 = vmax.f32 %v1393, 0.0
    %v1410 = vmax.f32 %v1394, 0.0
    %v1411 = vmax.f32 %v1395, 0.0
    %v1412 = vmax.f32 %v1396, 0.0
    %v1413 = vmax.f32 %v1397, 0.0
    %v1414 = vmax.f32 %v1398, 0.0
    %v1415 = vmax.f32 %v1399, 0.0
    %v1416 = vmax.f32 %v1400, 0.0
    %v1417 = vmax.f32 %v1401, 0.0
    %v1418 = vmax.f32 %v1402, 0.0
    %v1419 = vmax.f32 %v1403, 0.0
    %v1420 = vmax.f32 %v1404, 0.0
    %v1421 = vmax.f32 %v1405, 0.0
    %v1422 = vmax.f32 %v1406, 0.0
    %v1423 = vpack.c.bf16 %v1408, %v1407
    %v1424 = vpack.c.bf16 %v1410, %v1409
    %v1425 = vpack.c.bf16 %v1412, %v1411
    %v1426 = vpack.c.bf16 %v1414, %v1413
    %v1427 = vpack.c.bf16 %v1416, %v1415
    %v1428 = vpack.c.bf16 %v1418, %v1417
    %v1429 = vpack.c.bf16 %v1420, %v1419
    %v1430 = vpack.c.bf16 %v1422, %v1421
    %v1431 = vld [vmem:[#allocation10] sm:$0xf]
    %v1432 = vld [vmem:[#allocation10 + $0x4] sm:$0xf]
    %v1433 = vld [vmem:[#allocation10 + $0x8] sm:$0xf]
    %v1434 = vld [vmem:[#allocation10 + $0xc] sm:$0xf]
    %v1435 = vld [vmem:[#allocation10 + $0x10] sm:$0xf]
    %v1436 = vld [vmem:[#allocation10 + $0x14] sm:$0xf]
    %v1437 = vld [vmem:[#allocation10 + $0x18] sm:$0xf]
    %v1438 = vld [vmem:[#allocation10 + $0x1c] sm:$0xf]
    %v1439 = vld [vmem:[#allocation10 + $0x20] sm:$0xf]
    %v1440 = vld [vmem:[#allocation10 + $0x24] sm:$0xf]
    %v1441 = vld [vmem:[#allocation10 + $0x28] sm:$0xf]
    %v1442 = vld [vmem:[#allocation10 + $0x2c] sm:$0xf]
    %v1443 = vld [vmem:[#allocation10 + $0x30] sm:$0xf]
    %v1444 = vld [vmem:[#allocation10 + $0x34] sm:$0xf]
    %v1445 = vld [vmem:[#allocation10 + $0x38] sm:$0xf]
    %v1446 = vld [vmem:[#allocation10 + $0x3c] sm:$0xf]
    %v1447 = vld [vmem:[%s11] sm:$0x1]
    %1448 = vmatpush.bf16.msra.mxu0 %v1430
    %1449 = vmatpush.bf16.msra.mxu0 %v1429
    %1450 = vmatpush.bf16.msra.mxu0 %v1428
    %1451 = vmatpush.bf16.msra.mxu0 %v1427
    %1452 = vmatpush.bf16.msra.mxu0 %v1426
    %1453 = vmatpush.bf16.msra.mxu0 %v1425
    %1454 = vmatpush.bf16.msra.mxu0 %v1424
    %1455 = vmatpush.bf16.msra.mxu0 %v1423
    %1456 = vmatmul.bf16.gmra.mxu0 %v201
    %v1457 = vpop.f32.mrf.mxu0
    %v1458 = vadd.f32 0.0, %v1457
    %v1459 = vpop.f32.mrf.mxu0
    %v1460 = vadd.f32 0.0, %v1459
    %1461 = vmatmul.bf16.gmra.mxu0 %v202
    %v1462 = vpop.f32.mrf.mxu0
    %v1463 = vadd.f32 0.0, %v1462
    %v1464 = vpop.f32.mrf.mxu0
    %v1465 = vadd.f32 0.0, %v1464
    %1466 = vmatmul.bf16.gmra.mxu0 %v203
    %v1467 = vpop.f32.mrf.mxu0
    %v1468 = vadd.f32 0.0, %v1467
    %v1469 = vpop.f32.mrf.mxu0
    %v1470 = vadd.f32 0.0, %v1469
    %1471 = vmatmul.bf16.gmra.mxu0 %v204
    %v1472 = vpop.f32.mrf.mxu0
    %v1473 = vadd.f32 0.0, %v1472
    %v1474 = vpop.f32.mrf.mxu0
    %v1475 = vadd.f32 0.0, %v1474
    %1476 = vmatmul.bf16.gmra.mxu0 %v205
    %v1477 = vpop.f32.mrf.mxu0
    %v1478 = vadd.f32 0.0, %v1477
    %v1479 = vpop.f32.mrf.mxu0
    %v1480 = vadd.f32 0.0, %v1479
    %1481 = vmatmul.bf16.gmra.mxu0 %v206
    %v1482 = vpop.f32.mrf.mxu0
    %v1483 = vadd.f32 0.0, %v1482
    %v1484 = vpop.f32.mrf.mxu0
    %v1485 = vadd.f32 0.0, %v1484
    %1486 = vmatmul.bf16.gmra.mxu0 %v207
    %v1487 = vpop.f32.mrf.mxu0
    %v1488 = vadd.f32 0.0, %v1487
    %v1489 = vpop.f32.mrf.mxu0
    %v1490 = vadd.f32 0.0, %v1489
    %1491 = vmatmul.bf16.gmra.mxu0 %v208
    %v1492 = vpop.f32.mrf.mxu0
    %v1493 = vadd.f32 0.0, %v1492
    %v1494 = vpop.f32.mrf.mxu0
    %v1495 = vadd.f32 0.0, %v1494
    %1496 = vdwg.mxu0
    %v1497 = vpack.c.bf16 %v1460, %v1458
    %v1498 = vpack.c.bf16 %v1465, %v1463
    %v1499 = vpack.c.bf16 %v1470, %v1468
    %v1500 = vpack.c.bf16 %v1475, %v1473
    %v1501 = vpack.c.bf16 %v1480, %v1478
    %v1502 = vpack.c.bf16 %v1485, %v1483
    %v1503 = vpack.c.bf16 %v1490, %v1488
    %v1504 = vpack.c.bf16 %v1495, %v1493
    %v1506 = vperm.slane %v1447, 0
    %v1524 = vunpack.c.l.b16 %v1431
    %v1525 = vunpack.c.l.b16 %v1432
    %v1526 = vunpack.c.l.b16 %v1433
    %v1527 = vunpack.c.l.b16 %v1434
    %v1528 = vunpack.c.l.b16 %v1435
    %v1529 = vunpack.c.l.b16 %v1436
    %v1530 = vunpack.c.l.b16 %v1437
    %v1531 = vunpack.c.l.b16 %v1438
    %v1532 = vunpack.c.l.b16 %v1439
    %v1533 = vunpack.c.l.b16 %v1440
    %v1534 = vunpack.c.l.b16 %v1441
    %v1535 = vunpack.c.l.b16 %v1442
    %v1536 = vunpack.c.l.b16 %v1443
    %v1537 = vunpack.c.l.b16 %v1444
    %v1538 = vunpack.c.l.b16 %v1445
    %v1539 = vunpack.c.l.b16 %v1446
    %v1540 = vpack.c.b16 %v1525, %v1524
    %v1541 = vpack.c.b16 %v1527, %v1526
    %v1542 = vpack.c.b16 %v1529, %v1528
    %v1543 = vpack.c.b16 %v1531, %v1530
    %v1544 = vpack.c.b16 %v1533, %v1532
    %v1545 = vpack.c.b16 %v1535, %v1534
    %v1546 = vpack.c.b16 %v1537, %v1536
    %v1547 = vpack.c.b16 %v1539, %v1538
    %1556 = vmatpush.bf16.msra.mxu0 %v1547
    %1557 = vmatpush.bf16.msra.mxu0 %v1546
    %1558 = vmatpush.bf16.msra.mxu0 %v1545
    %1559 = vmatpush.bf16.msra.mxu0 %v1544
    %1560 = vmatpush.bf16.msra.mxu0 %v1543
    %1561 = vmatpush.bf16.msra.mxu0 %v1542
    %1562 = vmatpush.bf16.msra.mxu0 %v1541
    %1563 = vmatpush.bf16.msra.mxu0 %v1540
    %1564 = vmatmul.bf16.gmra.mxu0 %v1497
    %v1565 = vpop.f32.mrf.mxu0
    %v1566 = vadd.f32 %v1506, %v1565
    %v1567 = vpop.f32.mrf.mxu0
    %v1568 = vadd.f32 %v1506, %v1567
    %1569 = vmatmul.bf16.gmra.mxu0 %v1498
    %v1570 = vpop.f32.mrf.mxu0
    %v1571 = vadd.f32 %v1506, %v1570
    %v1572 = vpop.f32.mrf.mxu0
    %v1573 = vadd.f32 %v1506, %v1572
    %1574 = vmatmul.bf16.gmra.mxu0 %v1499
    %v1575 = vpop.f32.mrf.mxu0
    %v1576 = vadd.f32 %v1506, %v1575
    %v1577 = vpop.f32.mrf.mxu0
    %v1578 = vadd.f32 %v1506, %v1577
    %1579 = vmatmul.bf16.gmra.mxu0 %v1500
    %v1580 = vpop.f32.mrf.mxu0
    %v1581 = vadd.f32 %v1506, %v1580
    %v1582 = vpop.f32.mrf.mxu0
    %v1583 = vadd.f32 %v1506, %v1582
    %1584 = vmatmul.bf16.gmra.mxu0 %v1501
    %v1585 = vpop.f32.mrf.mxu0
    %v1586 = vadd.f32 %v1506, %v1585
    %v1587 = vpop.f32.mrf.mxu0
    %v1588 = vadd.f32 %v1506, %v1587
    %1589 = vmatmul.bf16.gmra.mxu0 %v1502
    %v1590 = vpop.f32.mrf.mxu0
    %v1591 = vadd.f32 %v1506, %v1590
    %v1592 = vpop.f32.mrf.mxu0
    %v1593 = vadd.f32 %v1506, %v1592
    %1594 = vmatmul.bf16.gmra.mxu0 %v1503
    %v1595 = vpop.f32.mrf.mxu0
    %v1596 = vadd.f32 %v1506, %v1595
    %v1597 = vpop.f32.mrf.mxu0
    %v1598 = vadd.f32 %v1506, %v1597
    %1599 = vmatmul.bf16.gmra.mxu0 %v1504
    %v1600 = vpop.f32.mrf.mxu0
    %v1601 = vadd.f32 %v1506, %v1600
    %v1602 = vpop.f32.mrf.mxu0
    %v1603 = vadd.f32 %v1506, %v1602
    %1604 = vdwg.mxu0
    %vm1605 = vcmp.lt.s32.totalorder %v425, 16
    %v1606 = vsel %vm1605, %v1566, -1e+30
    %v1607 = vsel %vm1605, %v1568, -1e+30
    %v1608 = vsel %vm1605, %v1571, -1e+30
    %v1609 = vsel %vm1605, %v1573, -1e+30
    %v1610 = vsel %vm1605, %v1576, -1e+30
    %v1611 = vsel %vm1605, %v1578, -1e+30
    %v1612 = vsel %vm1605, %v1581, -1e+30
    %v1613 = vsel %vm1605, %v1583, -1e+30
    %v1614 = vsel %vm1605, %v1586, -1e+30
    %v1615 = vsel %vm1605, %v1588, -1e+30
    %v1616 = vsel %vm1605, %v1591, -1e+30
    %v1617 = vsel %vm1605, %v1593, -1e+30
    %v1618 = vsel %vm1605, %v1596, -1e+30
    %v1619 = vsel %vm1605, %v1598, -1e+30
    %v1620 = vsel %vm1605, %v1601, -1e+30
    %v1621 = vsel %vm1605, %v1603, -1e+30
    %1622 = vmax.xlane.f32.xlu0 %v1606
    %v1623 = vpop.xlane.xlu0 %1622
    %1624 = vmax.xlane.f32.xlu0 %v1607
    %v1625 = vpop.xlane.xlu0 %1624
    %1626 = vmax.xlane.f32.xlu0 %v1608
    %v1627 = vpop.xlane.xlu0 %1626
    %1628 = vmax.xlane.f32.xlu0 %v1609
    %v1629 = vpop.xlane.xlu0 %1628
    %1630 = vmax.xlane.f32.xlu0 %v1610
    %v1631 = vpop.xlane.xlu0 %1630
    %1632 = vmax.xlane.f32.xlu0 %v1611
    %v1633 = vpop.xlane.xlu0 %1632
    %1634 = vmax.xlane.f32.xlu0 %v1612
    %v1635 = vpop.xlane.xlu0 %1634
    %1636 = vmax.xlane.f32.xlu0 %v1613
    %v1637 = vpop.xlane.xlu0 %1636
    %1638 = vmax.xlane.f32.xlu0 %v1614
    %v1639 = vpop.xlane.xlu0 %1638
    %1640 = vmax.xlane.f32.xlu0 %v1615
    %v1641 = vpop.xlane.xlu0 %1640
    %1642 = vmax.xlane.f32.xlu0 %v1616
    %v1643 = vpop.xlane.xlu0 %1642
    %1644 = vmax.xlane.f32.xlu0 %v1617
    %v1645 = vpop.xlane.xlu0 %1644
    %1646 = vmax.xlane.f32.xlu0 %v1618
    %v1647 = vpop.xlane.xlu0 %1646
    %1648 = vmax.xlane.f32.xlu0 %v1619
    %v1649 = vpop.xlane.xlu0 %1648
    %1650 = vmax.xlane.f32.xlu0 %v1620
    %v1651 = vpop.xlane.xlu0 %1650
    %1652 = vmax.xlane.f32.xlu0 %v1621
    %v1653 = vpop.xlane.xlu0 %1652
    %v1654 = vsub.f32 %v1606, %v1623
    %v1655 = vsub.f32 %v1607, %v1625
    %v1656 = vsub.f32 %v1608, %v1627
    %v1657 = vsub.f32 %v1609, %v1629
    %v1658 = vsub.f32 %v1610, %v1631
    %v1659 = vsub.f32 %v1611, %v1633
    %v1660 = vsub.f32 %v1612, %v1635
    %v1661 = vsub.f32 %v1613, %v1637
    %v1662 = vsub.f32 %v1614, %v1639
    %v1663 = vsub.f32 %v1615, %v1641
    %v1664 = vsub.f32 %v1616, %v1643
    %v1665 = vsub.f32 %v1617, %v1645
    %v1666 = vsub.f32 %v1618, %v1647
    %v1667 = vsub.f32 %v1619, %v1649
    %v1668 = vsub.f32 %v1620, %v1651
    %v1669 = vsub.f32 %v1621, %v1653
    %v1670 = vmul.f32 %v1654, 1.442695
    %v1671 = vpow.pop %v1670
    %v1672 = vmul.f32 %v1655, 1.442695
    %v1673 = vpow.pop %v1672
    %v1674 = vmul.f32 %v1656, 1.442695
    %v1675 = vpow.pop %v1674
    %v1676 = vmul.f32 %v1657, 1.442695
    %v1677 = vpow.pop %v1676
    %v1678 = vmul.f32 %v1658, 1.442695
    %v1679 = vpow.pop %v1678
    %v1680 = vmul.f32 %v1659, 1.442695
    %v1681 = vpow.pop %v1680
    %v1682 = vmul.f32 %v1660, 1.442695
    %v1683 = vpow.pop %v1682
    %v1684 = vmul.f32 %v1661, 1.442695
    %v1685 = vpow.pop %v1684
    %v1686 = vmul.f32 %v1662, 1.442695
    %v1687 = vpow.pop %v1686
    %v1688 = vmul.f32 %v1663, 1.442695
    %v1689 = vpow.pop %v1688
    %v1690 = vmul.f32 %v1664, 1.442695
    %v1691 = vpow.pop %v1690
    %v1692 = vmul.f32 %v1665, 1.442695
    %v1693 = vpow.pop %v1692
    %v1694 = vmul.f32 %v1666, 1.442695
    %v1695 = vpow.pop %v1694
    %v1696 = vmul.f32 %v1667, 1.442695
    %v1697 = vpow.pop %v1696
    %v1698 = vmul.f32 %v1668, 1.442695
    %v1699 = vpow.pop %v1698
    %v1700 = vmul.f32 %v1669, 1.442695
    %v1701 = vpow.pop %v1700
    %1702 = vadd.xlane.f32.xlu0 %v1671
    %v1703 = vpop.xlane.xlu0 %1702
    %1704 = vadd.xlane.f32.xlu0 %v1673
    %v1705 = vpop.xlane.xlu0 %1704
    %1706 = vadd.xlane.f32.xlu0 %v1675
    %v1707 = vpop.xlane.xlu0 %1706
    %1708 = vadd.xlane.f32.xlu0 %v1677
    %v1709 = vpop.xlane.xlu0 %1708
    %1710 = vadd.xlane.f32.xlu0 %v1679
    %v1711 = vpop.xlane.xlu0 %1710
    %1712 = vadd.xlane.f32.xlu0 %v1681
    %v1713 = vpop.xlane.xlu0 %1712
    %1714 = vadd.xlane.f32.xlu0 %v1683
    %v1715 = vpop.xlane.xlu0 %1714
    %1716 = vadd.xlane.f32.xlu0 %v1685
    %v1717 = vpop.xlane.xlu0 %1716
    %1718 = vadd.xlane.f32.xlu0 %v1687
    %v1719 = vpop.xlane.xlu0 %1718
    %1720 = vadd.xlane.f32.xlu0 %v1689
    %v1721 = vpop.xlane.xlu0 %1720
    %1722 = vadd.xlane.f32.xlu0 %v1691
    %v1723 = vpop.xlane.xlu0 %1722
    %1724 = vadd.xlane.f32.xlu0 %v1693
    %v1725 = vpop.xlane.xlu0 %1724
    %1726 = vadd.xlane.f32.xlu0 %v1695
    %v1727 = vpop.xlane.xlu0 %1726
    %1728 = vadd.xlane.f32.xlu0 %v1697
    %v1729 = vpop.xlane.xlu0 %1728
    %1730 = vadd.xlane.f32.xlu0 %v1699
    %v1731 = vpop.xlane.xlu0 %1730
    %1732 = vadd.xlane.f32.xlu0 %v1701
    %v1733 = vpop.xlane.xlu0 %1732
    %v1734 = vlog2.pop %v1703
    %v1735 = vmul.f32 %v1734, 0.6931472
    %v1736 = vlog2.pop %v1705
    %v1737 = vmul.f32 %v1736, 0.6931472
    %v1738 = vlog2.pop %v1707
    %v1739 = vmul.f32 %v1738, 0.6931472
    %v1740 = vlog2.pop %v1709
    %v1741 = vmul.f32 %v1740, 0.6931472
    %v1742 = vlog2.pop %v1711
    %v1743 = vmul.f32 %v1742, 0.6931472
    %v1744 = vlog2.pop %v1713
    %v1745 = vmul.f32 %v1744, 0.6931472
    %v1746 = vlog2.pop %v1715
    %v1747 = vmul.f32 %v1746, 0.6931472
    %v1748 = vlog2.pop %v1717
    %v1749 = vmul.f32 %v1748, 0.6931472
    %v1750 = vlog2.pop %v1719
    %v1751 = vmul.f32 %v1750, 0.6931472
    %v1752 = vlog2.pop %v1721
    %v1753 = vmul.f32 %v1752, 0.6931472
    %v1754 = vlog2.pop %v1723
    %v1755 = vmul.f32 %v1754, 0.6931472
    %v1756 = vlog2.pop %v1725
    %v1757 = vmul.f32 %v1756, 0.6931472
    %v1758 = vlog2.pop %v1727
    %v1759 = vmul.f32 %v1758, 0.6931472
    %v1760 = vlog2.pop %v1729
    %v1761 = vmul.f32 %v1760, 0.6931472
    %v1762 = vlog2.pop %v1731
    %v1763 = vmul.f32 %v1762, 0.6931472
    %v1764 = vlog2.pop %v1733
    %v1765 = vmul.f32 %v1764, 0.6931472
    %v1766 = vsub.f32 %v1654, %v1735
    %v1767 = vsub.f32 %v1655, %v1737
    %v1768 = vsub.f32 %v1656, %v1739
    %v1769 = vsub.f32 %v1657, %v1741
    %v1770 = vsub.f32 %v1658, %v1743
    %v1771 = vsub.f32 %v1659, %v1745
    %v1772 = vsub.f32 %v1660, %v1747
    %v1773 = vsub.f32 %v1661, %v1749
    %v1774 = vsub.f32 %v1662, %v1751
    %v1775 = vsub.f32 %v1663, %v1753
    %v1776 = vsub.f32 %v1664, %v1755
    %v1777 = vsub.f32 %v1665, %v1757
    %v1778 = vsub.f32 %v1666, %v1759
    %v1779 = vsub.f32 %v1667, %v1761
    %v1780 = vsub.f32 %v1668, %v1763
    %v1781 = vsub.f32 %v1669, %v1765
    %1782 = vst [vmem:[#allocation11] sm:$0xff] %v1766
    %1783 = vst [vmem:[#allocation11 + $0x8] sm:$0xff] %v1767
    %1784 = vst [vmem:[#allocation11 + $0x10] sm:$0xff] %v1768
    %1785 = vst [vmem:[#allocation11 + $0x18] sm:$0xff] %v1769
    %1786 = vst [vmem:[#allocation11 + $0x20] sm:$0xff] %v1770
    %1787 = vst [vmem:[#allocation11 + $0x28] sm:$0xff] %v1771
    %1788 = vst [vmem:[#allocation11 + $0x30] sm:$0xff] %v1772
    %1789 = vst [vmem:[#allocation11 + $0x38] sm:$0xff] %v1773
    %1790 = vst [vmem:[#allocation11 + $0x40] sm:$0xff] %v1774
    %1791 = vst [vmem:[#allocation11 + $0x48] sm:$0xff] %v1775
    %1792 = vst [vmem:[#allocation11 + $0x50] sm:$0xff] %v1776
    %1793 = vst [vmem:[#allocation11 + $0x58] sm:$0xff] %v1777
    %1794 = vst [vmem:[#allocation11 + $0x60] sm:$0xff] %v1778
    %1795 = vst [vmem:[#allocation11 + $0x68] sm:$0xff] %v1779
    %1796 = vst [vmem:[#allocation11 + $0x70] sm:$0xff] %v1780
    %1797 = vst [vmem:[#allocation11 + $0x78] sm:$0xff] %v1781
    // Predicated region
    $region70: #{tpu_custom_call.1} parent=1 // pred_check
      _
    $region71: #{tpu_custom_call.1} parent=1 // pred_check_branch
      %1799 = sbr.rel (0) target = $region73
    $region72: #{tpu_custom_call.1} parent=1 // pred_region
      %1801 = vsyncadd [#allocation4], 0
      %s1802 = sshll.u32 [#allocation11], 4
      %s1803 = int_to_ptr.vmem [resolvable:$true] %s1802
      %s1804 = sshll.u32 %s12, 4
      %s1805 = int_to_ptr.hbm [resolvable:$true] %s1804
      %1810 = dma.vmem_to_hbm [thread:$0]  %s1803, 2048, %s1805, [#allocation4], 128, 128, 8
    $region73: #{tpu_custom_call.1} parent=1 // pred_fallthru
      _
    // Predicated region
    $region74: #{tpu_custom_call.1} parent=1 // pred_check
      _
    $region75: #{tpu_custom_call.1} parent=1 // pred_check_branch
      %1812 = sbr.rel (0) target = $region77
    $region76: #{tpu_custom_call.1} parent=1 // pred_region
      %1814 = dma.done [#allocation4], 2048
    $region77: #{tpu_custom_call.1} parent=1 // pred_fallthru
      _
    %1815 = vsyncpa [#allocation3], 1
    %1816 = vsyncpa [#allocation6], 1
    %1817 = vsyncpa [#allocation9], 1
    %1818 = vsyncpa [#allocation4], 1

</llo_original>
